<compile_context>
chip_gen: v5e
topology: v5e:2x2
jax: 0.10.0
libtpu: 0.0.40
codegen_flags: <defaults>
</compile_context>

<pallas_src>
import functools

import jax
import jax.numpy as jnp
from jax.experimental import pallas as pl
from jax.experimental.pallas import tpu as pltpu


def _round_up(x, m):
    return (x + m - 1) // m * m


def _pad_channels(c):
    # Lane-dense matmul N dim / output stores: pad small channel counts up to
    # the 128-lane boundary (zero weights / affines keep it numerically exact).
    return c if c >= 128 else 128


def _pad_last(a, target):
    pad = target - a.shape[-1]
    if pad == 0:
        return a
    cfg = [(0, 0)] * (a.ndim - 1) + [(0, pad)]
    return jnp.pad(a, cfg)


def _vmem_limit_bytes():
    """Per-generation VMEM budget (100 MiB on 128-MiB parts, 56 MiB on v7x)."""
    try:
        kind = jax.devices()[0].device_kind.lower()
    except Exception:
        kind = ""
    if "v7" in kind or "tpu7" in kind:
        return 56 * 1024 * 1024
    if any(t in kind for t in ("v4", "v5", "v6")):
        return 100 * 1024 * 1024
    return 32 * 1024 * 1024


# ----------------------------------------------------------------------------
# One-time capability probes (cached).  Both fall back gracefully: a failed
# probe only selects the conservative (still-correct) code path.
# ----------------------------------------------------------------------------
_BF16_OK = None
_SINGLE_BUF_OK = None


def _bf16_ops_supported():
    """Probe the packed-bf16 ops the fast path needs: major-dim merge reshape,
    odd-sublane-offset value slices, lane-offset slices, partial stores."""
    global _BF16_OK
    if _BF16_OK is not None:
        return _BF16_OK
    try:
        def k(x_ref, o_ref):
            v = x_ref[...].reshape(64, 128)
            a = v[3:11, :]                 # odd sublane offset slice
            b = v[16:24, 4:68]             # lane-offset slice
            o_ref[1:9, 0:64] = a[:, 0:64] + b
            o_ref[1:9, 64:128] = a[:, 64:128]

        fn = pl.pallas_call(
            k, out_shape=jax.ShapeDtypeStruct((16, 128), jnp.bfloat16))
        x = (jnp.arange(4 * 16 * 128, dtype=jnp.float32) % 100.0
             ).reshape(4, 16, 128).astype(jnp.bfloat16)
        out = jax.block_until_ready(jax.jit(fn)(x))
        xr = x.reshape(64, 128)
        ok_lo = jnp.array_equal(out[1:9, 0:64], xr[3:11, 0:64] + xr[16:24, 4:68])
        ok_hi = jnp.array_equal(out[1:9, 64:128], xr[3:11, 64:128])
        _BF16_OK = bool(ok_lo) and bool(ok_hi)
    except Exception:
        _BF16_OK = False
    return _BF16_OK


def _single_buffer_weights_supported():
    """Probe pl.Buffered(1) single-buffering on a constant-index-map input."""
    global _SINGLE_BUF_OK
    if _SINGLE_BUF_OK is not None:
        return _SINGLE_BUF_OK
    try:
        def k(x_ref, o_ref):
            o_ref[...] = x_ref[...] + 1.0

        fn = pl.pallas_call(
            k,
            out_shape=jax.ShapeDtypeStruct((8, 128), jnp.float32),
            grid=(2,),
            in_specs=[pl.BlockSpec((8, 128), lambda i: (0, 0),
                                   pipeline_mode=pl.Buffered(buffer_count=1))],
            out_specs=pl.BlockSpec((8, 128), lambda i: (0, 0)),
        )
        x = jnp.arange(8 * 128, dtype=jnp.float32).reshape(8, 128)
        out = jax.block_until_ready(jax.jit(fn)(x))
        _SINGLE_BUF_OK = bool(jnp.array_equal(out, x + 1.0))
    except Exception:
        _SINGLE_BUF_OK = False
    return _SINGLE_BUF_OK


def _warm_probes():
    _bf16_ops_supported()
    _single_buffer_weights_supported()


# ----------------------------------------------------------------------------
# In-kernel fused Conv3x3(SAME) + folded-BN affine + ReLU.
# The persistent padded frame (scratch) makes every 3x3 tap a contiguous row
# window of the flattened frame; the zero pad columns double as the W halo.
# ----------------------------------------------------------------------------
def _conv3x3_bn_relu(act, frame_ref, w_ref, scale, bias, *, Ho, Wo, Wp):
    """act: (Ho, Wo, cin) value; frame_ref: VMEM (Ho+4, Wp, cin) persistent
    scratch; w_ref: (9*cin, cout) bf16 ref, rows ordered (dy, dx, cin);
    scale/bias: (1, cout) f32.  Returns (Ho, Wo, cout) f32."""
    cin = frame_ref.shape[-1]
    cout = w_ref.shape[-1]
    fdt = frame_ref.dtype

    # Refresh the zero halo rows / pad columns every step (cheap strips; done
    # per-step so megacore grid splitting stays correct on multi-core chips).
    frame_ref[0:2, :, :] = jnp.zeros((2, Wp, cin), fdt)
    frame_ref[2 + Ho:4 + Ho, :, :] = jnp.zeros((2, Wp, cin), fdt)
    frame_ref[2:2 + Ho, Wo:Wp, :] = jnp.zeros((Ho, Wp - Wo, cin), fdt)
    # Write the activation into the frame interior.
    frame_ref[2:2 + Ho, 0:Wo, :] = act.astype(fdt)

    # Flat row-major view: every (dy, dx) tap is a contiguous row window.
    xf = frame_ref[...].reshape((Ho + 4) * Wp, cin)
    base = 2 * Wp
    starts = [base + (dy - 1) * Wp + (dx - 1)
              for dy in range(3) for dx in range(3)]

    if cin >= 128:
        # Channels already saturate the MXU contraction depth: accumulate nine
        # per-tap matmuls and skip the 9x patch-matrix materialisation.
        acc = jnp.zeros((Ho * Wp, cout), jnp.float32)
        for t, s in enumerate(starts):
            tap = xf[s:s + Ho * Wp, :].astype(jnp.bfloat16)
            acc = acc + jnp.dot(tap, w_ref[t * cin:(t + 1) * cin, :],
                                preferred_element_type=jnp.float32)
    else:
        # Small channel count: one im2col matmul with K = 9*cin, bf16 patches.
        taps = [xf[s:s + Ho * Wp, :] for s in starts]
        patches = jnp.concatenate(taps, axis=-1).astype(jnp.bfloat16)
        acc = jnp.dot(patches, w_ref[...], preferred_element_type=jnp.float32)

    y = jnp.maximum(acc * scale + bias, 0.0)          # conv bias + BN + ReLU
    # Drop the Wp - Wo garbage columns (their windows only read zeros / wrap
    # rows and they are never fed forward).
    return y.reshape(Ho, Wp, cout)[:, :Wo, :]


# ----------------------------------------------------------------------------
# Fused Down kernel: maxpool2x2 -> conv+BN+ReLU -> conv+BN+ReLU (one image).
# ----------------------------------------------------------------------------
def _down_fused_kernel(x_ref, w1_ref, s1_ref, b1_ref, w2_ref, s2_ref, b2_ref,
                       o_ref, f1_ref, f2_ref, *, Ho, Wo, Wp, Cin):
    # x_ref: (1, Ho, 2, Wo, 2*Cin) -- NHWC image with H split as (Ho, 2) and
    # the minor (2, Cin) pair merged into lanes by a free wrapper reshape.
    x = x_ref[0]                                              # (Ho, 2, Wo, 2*Cin)
    xrow = jnp.maximum(x[:, 0], x[:, 1])                      # pool along H
    pooled = jnp.maximum(xrow[:, :, :Cin], xrow[:, :, Cin:])  # pool along W

    y1 = _conv3x3_bn_relu(pooled, f1_ref, w1_ref, s1_ref[...], b1_ref[...],
                          Ho=Ho, Wo=Wo, Wp=Wp)
    y2 = _conv3x3_bn_relu(y1, f2_ref, w2_ref, s2_ref[...], b2_ref[...],
                          Ho=Ho, Wo=Wo, Wp=Wp)
    o_ref[0] = y2.astype(o_ref.dtype)


# ----------------------------------------------------------------------------
# NHWC core (params padded to lane-dense channel counts, one pallas_call).
# ----------------------------------------------------------------------------
def _down_nhwc(x_nhwc, params):
    N, H, W, Cin = x_nhwc.shape
    # TODO(synk): PyTorch MaxPool2d(2) floors odd spatial sizes; only even H/W
    #             are supported here.
    assert H % 2 == 0 and W % 2 == 0, (H, W)
    Ho, Wo = H // 2, W // 2
    Cmid = params["w1"].shape[-1]
    Cout = params["w2"].shape[-1]
    Cmid_p = _pad_channels(Cmid)
    Cout_p = _pad_channels(Cout)
    Wp = _round_up(Wo + 2, 16)     # padded width, aligned even for bf16 packing

    use_bf16 = _bf16_ops_supported()
    act_dtype = jnp.bfloat16 if use_bf16 else jnp.float32

    # One fused pass: cast + free reinterpretation of the contiguous NHWC
    # tensor (H -> (Ho, 2); minor (2, Cin) merged into lanes for the pool).
    x = x_nhwc.astype(act_dtype).reshape(N, Ho, 2, Wo, 2 * Cin)

    # Conv weights in im2col layout (rows ordered dy, dx, cin), zero-padded to
    # lane-dense channel counts, bf16 for the MXU.
    w1 = _pad_last(params["w1"], Cmid_p).reshape(9 * Cin, Cmid_p).astype(jnp.bfloat16)
    w2 = jnp.pad(params["w2"],
                 ((0, 0), (0, 0), (0, Cmid_p - Cmid), (0, Cout_p - Cout)))
    w2 = w2.reshape(9 * Cmid_p, Cout_p).astype(jnp.bfloat16)
    s1 = _pad_last(params["s1"], Cmid_p).reshape(1, Cmid_p).astype(jnp.float32)
    b1 = _pad_last(params["b1"], Cmid_p).reshape(1, Cmid_p).astype(jnp.float32)
    s2 = _pad_last(params["s2"], Cout_p).reshape(1, Cout_p).astype(jnp.float32)
    b2 = _pad_last(params["b2"], Cout_p).reshape(1, Cout_p).astype(jnp.float32)

    # Weights / affines never change across the batch grid axis: constant index
    # maps keep them VMEM-resident, and (if supported) single-buffering avoids
    # duplicating them in VMEM.
    if _single_buffer_weights_supported():
        def wspec(shape):
            nd = len(shape)
            return pl.BlockSpec(shape, lambda n: (0,) * nd,
                                pipeline_mode=pl.Buffered(buffer_count=1))
    else:
        def wspec(shape):
            nd = len(shape)
            return pl.BlockSpec(shape, lambda n: (0,) * nd)

    kernel = functools.partial(_down_fused_kernel, Ho=Ho, Wo=Wo, Wp=Wp, Cin=Cin)
    out = pl.pallas_call(
        kernel,
        out_shape=jax.ShapeDtypeStruct((N, Ho, Wo, Cout_p), x_nhwc.dtype),
        grid_spec=pltpu.PrefetchScalarGridSpec(
            num_scalar_prefetch=0,
            grid=(N,),
            in_specs=[
                pl.BlockSpec((1, Ho, 2, Wo, 2 * Cin),
                             lambda n: (n, 0, 0, 0, 0)),
                wspec((9 * Cin, Cmid_p)),
                wspec((1, Cmid_p)),
                wspec((1, Cmid_p)),
                wspec((9 * Cmid_p, Cout_p)),
                wspec((1, Cout_p)),
                wspec((1, Cout_p)),
            ],
            out_specs=pl.BlockSpec((1, Ho, Wo, Cout_p),
                                   lambda n: (n, 0, 0, 0)),
            scratch_shapes=[
                pltpu.VMEM((Ho + 4, Wp, Cin), act_dtype),     # conv1 halo frame
                pltpu.VMEM((Ho + 4, Wp, Cmid_p), act_dtype),  # conv2 halo frame
            ],
        ),
        compiler_params=pltpu.CompilerParams(
            dimension_semantics=("parallel",),      # megacore over batch
            vmem_limit_bytes=_vmem_limit_bytes(),
        ),
    )(x, w1, s1, b1, w2, s2, b2)

    return out[..., :Cout]                          # drop padded out channels


@jax.jit
def _down_nhwc_jit(x_nhwc, params):
    return _down_nhwc(x_nhwc, params)


@jax.jit
def _down_nchw_jit(x_nchw, params):
    y = _down_nhwc(jnp.transpose(x_nchw, (0, 2, 3, 1)), params)
    return jnp.transpose(y, (0, 3, 1, 2))


def down_forward_nhwc(x_nhwc, params):
    """NHWC-in / NHWC-out entry point (no layout transposes at all)."""
    _warm_probes()
    return _down_nhwc_jit(x_nhwc, params)


def down_forward(x_nchw, params):
    """NCHW-in / NCHW-out wrapper matching the PyTorch module; the transposes,
    dtype cast and channel slice all fuse under one jit around the kernel."""
    _warm_probes()
    return _down_nchw_jit(x_nchw, params)


# ----------------------------------------------------------------------------
# Parameter construction (deterministic) + folded BN affine (eval mode).
# ----------------------------------------------------------------------------
def _fold_bn(conv_bias, gamma, beta, running_mean, running_var, eps=1e-5):
    scale = gamma / jnp.sqrt(running_var + eps)
    bias = (conv_bias - running_mean) * scale + beta
    return scale, bias


def make_down_params(key, in_channels, out_channels):
    mid_channels = out_channels
    ks = jax.random.split(key, 12)

    def conv_params(kw, kb, cin, cout):
        fan_in = cin * 9
        bound = 1.0 / jnp.sqrt(fan_in)
        w = jax.random.uniform(kw, (3, 3, cin, cout), jnp.float32, -bound, bound)
        b = jax.random.uniform(kb, (cout,), jnp.float32, -bound, bound)
        return w, b

    def bn_params(kg, kb, km, kv, c):
        gamma = jax.random.uniform(kg, (c,), jnp.float32, 0.5, 1.5)
        beta = jax.random.normal(kb, (c,)) * 0.1
        rmean = jax.random.normal(km, (c,)) * 0.1
        rvar = jax.random.uniform(kv, (c,), jnp.float32, 0.5, 1.5)
        return gamma, beta, rmean, rvar

    w1, b1 = conv_params(ks[0], ks[1], in_channels, mid_channels)
    g1, be1, m1, v1 = bn_params(ks[2], ks[3], ks[4], ks[5], mid_channels)
    w2, b2 = conv_params(ks[6], ks[7], mid_channels, out_channels)
    g2, be2, m2, v2 = bn_params(ks[8], ks[9], ks[10], ks[11], out_channels)

    s1, bb1 = _fold_bn(b1, g1, be1, m1, v1)
    s2, bb2 = _fold_bn(b2, g2, be2, m2, v2)
    return {"w1": w1, "s1": s1, "b1": bb1, "w2": w2, "s2": s2, "b2": bb2}


# ----------------------------------------------------------------------------
# Pure-JAX reference (precision-matched: bf16 matmul operands, f32 accumulate).
# ----------------------------------------------------------------------------
def down_reference(x_nchw, params):
    x = jnp.transpose(x_nchw, (0, 2, 3, 1))
    N, H, W, C = x.shape
    x = x.reshape(N, H // 2, 2, W // 2, 2, C).max(axis=(2, 4))

    def cbr(x, w, s, b):
        xq = x.astype(jnp.bfloat16).astype(jnp.float32)
        wq = w.astype(jnp.bfloat16).astype(jnp.float32)
        y = jax.lax.conv_general_dilated(
            xq, wq, (1, 1), "SAME",
            dimension_numbers=("NHWC", "HWIO", "NHWC"),
            precision=jax.lax.Precision.HIGHEST,
        )
        return jnp.maximum(y * s + b, 0.0)

    x = cbr(x, params["w1"], params["s1"], params["b1"])
    x = cbr(x, params["w2"], params["s2"], params["b2"])
    return jnp.transpose(x, (0, 3, 1, 2))


if __name__ == "__main__":
    key = jax.random.PRNGKey(0)
    k_x, k_p = jax.random.split(key)

    N, Cin, Hin, Win = 2, 4, 16, 16
    Cout = 8
    x = jax.random.normal(k_x, (N, Cin, Hin, Win), jnp.float32)
    params = make_down_params(k_p, Cin, Cout)

    y = jax.block_until_ready(down_forward(x, params))
    y_ref = down_reference(x, params)

    assert y.shape == (N, Cout, Hin // 2, Win // 2), y.shape
    err = float(jnp.max(jnp.abs(y - y_ref)))
    assert err < 2e-2, err
    print("KERNEL_OK")
</pallas_src>

<mosaic_0001>
module attributes {stable_mosaic.version = 11 : i64} {
  func.func @k(%arg0: memref<4x16x128xbf16, #tpu.memory_space<vmem>>, %arg1: memref<16x128xbf16, #tpu.memory_space<vmem>>) attributes {dimension_semantics = [], scalar_prefetch = 0 : i64, scratch_operands = 0 : i64, tpu.core_type = #tpu.core_type<tc>} {
    %c0 = arith.constant 0 : index
    %c0_0 = arith.constant 0 : index
    %c0_1 = arith.constant 0 : index
    %0 = vector.load %arg0[%c0, %c0_0, %c0_1] : memref<4x16x128xbf16, #tpu.memory_space<vmem>>, vector<4x16x128xbf16>
    %1 = vector.shape_cast %0 : vector<4x16x128xbf16> to vector<64x128xbf16>
    %2 = vector.extract_strided_slice %1 {offsets = [3, 0], sizes = [8, 128], strides = [1, 1]} : vector<64x128xbf16> to vector<8x128xbf16>
    %3 = vector.extract_strided_slice %1 {offsets = [16, 4], sizes = [8, 64], strides = [1, 1]} : vector<64x128xbf16> to vector<8x64xbf16>
    %4 = vector.extract_strided_slice %2 {offsets = [0, 0], sizes = [8, 64], strides = [1, 1]} : vector<8x128xbf16> to vector<8x64xbf16>
    %5 = arith.addf %4, %3 : vector<8x64xbf16>
    %c1 = arith.constant 1 : index
    %c0_2 = arith.constant 0 : index
    %6 = vector.load %arg1[%c1, %c0_2] : memref<16x128xbf16, #tpu.memory_space<vmem>>, vector<8x64xbf16>
    tpu.vector_store %arg1[%c1, %c0_2], %5 {strides = array<i32>} : memref<16x128xbf16, #tpu.memory_space<vmem>>, vector<8x64xbf16>,
    %7 = vector.extract_strided_slice %2 {offsets = [0, 64], sizes = [8, 64], strides = [1, 1]} : vector<8x128xbf16> to vector<8x64xbf16>
    %c1_3 = arith.constant 1 : index
    %c64 = arith.constant 64 : index
    %8 = vector.load %arg1[%c1_3, %c64] : memref<16x128xbf16, #tpu.memory_space<vmem>>, vector<8x64xbf16>
    tpu.vector_store %arg1[%c1_3, %c64], %7 {strides = array<i32>} : memref<16x128xbf16, #tpu.memory_space<vmem>>, vector<8x64xbf16>,
    return
  }
}

module attributes {stable_mosaic.version = 11 : i64} {
  func.func @k(%arg0: i32, %arg1: memref<8x128xf32, #tpu.memory_space<vmem>>, %arg2: memref<8x128xf32, #tpu.memory_space<vmem>>) attributes {dimension_semantics = [#tpu.dimension_semantics<arbitrary>], iteration_bounds = array<i64: 2>, scalar_prefetch = 0 : i64, scratch_operands = 0 : i64, tpu.core_type = #tpu.core_type<tc>, window_params = [{pipeline_mode = #tpu.pipeline_mode<synchronous>, transform_indices = @transform_0, window_bounds = array<i64: 8, 128>}, {pipeline_mode = #tpu.pipeline_mode<synchronous>, transform_indices = @transform_1, window_bounds = array<i64: 8, 128>}]} {
    %c0 = arith.constant 0 : index
    %c0_0 = arith.constant 0 : index
    %0 = vector.load %arg1[%c0, %c0_0] : memref<8x128xf32, #tpu.memory_space<vmem>>, vector<8x128xf32>
    %cst = arith.constant 1.000000e+00 : f32
    %1 = vector.broadcast %cst : f32 to vector<8x128xf32>
    %2 = arith.addf %0, %1 : vector<8x128xf32>
    %c0_1 = arith.constant 0 : index
    %c0_2 = arith.constant 0 : index
    %3 = vector.load %arg2[%c0_1, %c0_2] : memref<8x128xf32, #tpu.memory_space<vmem>>, vector<8x128xf32>
    tpu.vector_store %arg2[%c0_1, %c0_2], %2 {strides = array<i32>} : memref<8x128xf32, #tpu.memory_space<vmem>>, vector<8x128xf32>,
    return
  }
  func.func @transform_0(%arg0: i32) -> (i32, i32) {
    %c0_i32 = arith.constant 0 : i32
    %c0_i32_0 = arith.constant 0 : i32
    %c0_i32_1 = arith.constant 0 : i32
    return %c0_i32, %c0_i32_0 : i32, i32
  }
  func.func @transform_1(%arg0: i32) -> (i32, i32) {
    %c0_i32 = arith.constant 0 : i32
    %c0_i32_0 = arith.constant 0 : i32
    %c0_i32_1 = arith.constant 0 : i32
    return %c0_i32, %c0_i32_0 : i32, i32
  }
}

module attributes {stable_mosaic.version = 11 : i64} {
  func.func @_down_fused_kernel(%arg0: i32, %arg1: memref<1x8x2x8x8xf32, #tpu.memory_space<vmem>>, %arg2: memref<36x128xbf16, #tpu.memory_space<vmem>>, %arg3: memref<1x128xf32, #tpu.memory_space<vmem>>, %arg4: memref<1x128xf32, #tpu.memory_space<vmem>>, %arg5: memref<1152x128xbf16, #tpu.memory_space<vmem>>, %arg6: memref<1x128xf32, #tpu.memory_space<vmem>>, %arg7: memref<1x128xf32, #tpu.memory_space<vmem>>, %arg8: memref<1x8x8x128xf32, #tpu.memory_space<vmem>>, %arg9: memref<12x16x4xf32, #tpu.memory_space<vmem>>, %arg10: memref<12x16x128xf32, #tpu.memory_space<vmem>>) attributes {dimension_semantics = [#tpu.dimension_semantics<parallel>], iteration_bounds = array<i64: 2>, scalar_prefetch = 0 : i64, scratch_operands = 2 : i64, tpu.core_type = #tpu.core_type<tc>, window_params = [{transform_indices = @transform_0, window_bounds = array<i64: 1, 8, 2, 8, 8>}, {pipeline_mode = #tpu.pipeline_mode<synchronous>, transform_indices = @transform_1, window_bounds = array<i64: 36, 128>}, {pipeline_mode = #tpu.pipeline_mode<synchronous>, transform_indices = @transform_2, window_bounds = array<i64: 1, 128>}, {pipeline_mode = #tpu.pipeline_mode<synchronous>, transform_indices = @transform_3, window_bounds = array<i64: 1, 128>}, {pipeline_mode = #tpu.pipeline_mode<synchronous>, transform_indices = @transform_4, window_bounds = array<i64: 1152, 128>}, {pipeline_mode = #tpu.pipeline_mode<synchronous>, transform_indices = @transform_5, window_bounds = array<i64: 1, 128>}, {pipeline_mode = #tpu.pipeline_mode<synchronous>, transform_indices = @transform_6, window_bounds = array<i64: 1, 128>}, {transform_indices = @transform_7, window_bounds = array<i64: 1, 8, 8, 128>}]} {
    %c0 = arith.constant 0 : index
    %c0_0 = arith.constant 0 : index
    %c0_1 = arith.constant 0 : index
    %c0_2 = arith.constant 0 : index
    %c0_3 = arith.constant 0 : index
    %0 = vector.load %arg1[%c0, %c0_0, %c0_1, %c0_2, %c0_3] : memref<1x8x2x8x8xf32, #tpu.memory_space<vmem>>, vector<1x8x2x8x8xf32>
    %1 = vector.shape_cast %0 : vector<1x8x2x8x8xf32> to vector<8x2x8x8xf32>
    %2 = vector.extract_strided_slice %1 {offsets = [0, 0, 0, 0], sizes = [8, 1, 8, 8], strides = [1, 1, 1, 1]} : vector<8x2x8x8xf32> to vector<8x1x8x8xf32>
    %3 = vector.shape_cast %2 : vector<8x1x8x8xf32> to vector<8x8x8xf32>
    %4 = vector.extract_strided_slice %1 {offsets = [0, 1, 0, 0], sizes = [8, 1, 8, 8], strides = [1, 1, 1, 1]} : vector<8x2x8x8xf32> to vector<8x1x8x8xf32>
    %5 = vector.shape_cast %4 : vector<8x1x8x8xf32> to vector<8x8x8xf32>
    %6 = arith.maximumf %3, %5 : vector<8x8x8xf32>
    %7 = vector.extract_strided_slice %6 {offsets = [0, 0, 0], sizes = [8, 8, 4], strides = [1, 1, 1]} : vector<8x8x8xf32> to vector<8x8x4xf32>
    %8 = vector.extract_strided_slice %6 {offsets = [0, 0, 4], sizes = [8, 8, 4], strides = [1, 1, 1]} : vector<8x8x8xf32> to vector<8x8x4xf32>
    %9 = arith.maximumf %7, %8 : vector<8x8x4xf32>
    %c0_4 = arith.constant 0 : index
    %c0_5 = arith.constant 0 : index
    %10 = vector.load %arg3[%c0_4, %c0_5] : memref<1x128xf32, #tpu.memory_space<vmem>>, vector<1x128xf32>
    %c0_6 = arith.constant 0 : index
    %c0_7 = arith.constant 0 : index
    %11 = vector.load %arg4[%c0_6, %c0_7] : memref<1x128xf32, #tpu.memory_space<vmem>>, vector<1x128xf32>
    %cst = arith.constant 0.000000e+00 : f32
    %12 = vector.broadcast %cst : f32 to vector<2x16x4xf32>
    %c0_8 = arith.constant 0 : index
    %c0_9 = arith.constant 0 : index
    %c0_10 = arith.constant 0 : index
    %13 = vector.load %arg9[%c0_8, %c0_9, %c0_10] : memref<12x16x4xf32, #tpu.memory_space<vmem>>, vector<2x16x4xf32>
    tpu.vector_store %arg9[%c0_8, %c0_9, %c0_10], %12 {strides = array<i32>} : memref<12x16x4xf32, #tpu.memory_space<vmem>>, vector<2x16x4xf32>,
    %cst_11 = arith.constant 0.000000e+00 : f32
    %14 = vector.broadcast %cst_11 : f32 to vector<2x16x4xf32>
    %c10 = arith.constant 10 : index
    %c0_12 = arith.constant 0 : index
    %c0_13 = arith.constant 0 : index
    %15 = vector.load %arg9[%c10, %c0_12, %c0_13] : memref<12x16x4xf32, #tpu.memory_space<vmem>>, vector<2x16x4xf32>
    tpu.vector_store %arg9[%c10, %c0_12, %c0_13], %14 {strides = array<i32>} : memref<12x16x4xf32, #tpu.memory_space<vmem>>, vector<2x16x4xf32>,
    %cst_14 = arith.constant 0.000000e+00 : f32
    %16 = vector.broadcast %cst_14 : f32 to vector<8x8x4xf32>
    %c2 = arith.constant 2 : index
    %c8 = arith.constant 8 : index
    %c0_15 = arith.constant 0 : index
    %17 = vector.load %arg9[%c2, %c8, %c0_15] : memref<12x16x4xf32, #tpu.memory_space<vmem>>, vector<8x8x4xf32>
    tpu.vector_store %arg9[%c2, %c8, %c0_15], %16 {strides = array<i32>} : memref<12x16x4xf32, #tpu.memory_space<vmem>>, vector<8x8x4xf32>,
    %c2_16 = arith.constant 2 : index
    %c0_17 = arith.constant 0 : index
    %c0_18 = arith.constant 0 : index
    %18 = vector.load %arg9[%c2_16, %c0_17, %c0_18] : memref<12x16x4xf32, #tpu.memory_space<vmem>>, vector<8x8x4xf32>
    tpu.vector_store %arg9[%c2_16, %c0_17, %c0_18], %9 {strides = array<i32>} : memref<12x16x4xf32, #tpu.memory_space<vmem>>, vector<8x8x4xf32>,
    %c0_19 = arith.constant 0 : index
    %c0_20 = arith.constant 0 : index
    %c0_21 = arith.constant 0 : index
    %19 = vector.load %arg9[%c0_19, %c0_20, %c0_21] : memref<12x16x4xf32, #tpu.memory_space<vmem>>, vector<12x16x4xf32>
    %20 = vector.shape_cast %19 : vector<12x16x4xf32> to vector<192x4xf32>
    %21 = vector.extract_strided_slice %20 {offsets = [15, 0], sizes = [128, 4], strides = [1, 1]} : vector<192x4xf32> to vector<128x4xf32>
    %22 = vector.extract_strided_slice %20 {offsets = [16, 0], sizes = [128, 4], strides = [1, 1]} : vector<192x4xf32> to vector<128x4xf32>
    %23 = vector.extract_strided_slice %20 {offsets = [17, 0], sizes = [128, 4], strides = [1, 1]} : vector<192x4xf32> to vector<128x4xf32>
    %24 = vector.extract_strided_slice %20 {offsets = [31, 0], sizes = [128, 4], strides = [1, 1]} : vector<192x4xf32> to vector<128x4xf32>
    %25 = vector.extract_strided_slice %20 {offsets = [32, 0], sizes = [128, 4], strides = [1, 1]} : vector<192x4xf32> to vector<128x4xf32>
    %26 = vector.extract_strided_slice %20 {offsets = [33, 0], sizes = [128, 4], strides = [1, 1]} : vector<192x4xf32> to vector<128x4xf32>
    %27 = vector.extract_strided_slice %20 {offsets = [47, 0], sizes = [128, 4], strides = [1, 1]} : vector<192x4xf32> to vector<128x4xf32>
    %28 = vector.extract_strided_slice %20 {offsets = [48, 0], sizes = [128, 4], strides = [1, 1]} : vector<192x4xf32> to vector<128x4xf32>
    %29 = vector.extract_strided_slice %20 {offsets = [49, 0], sizes = [128, 4], strides = [1, 1]} : vector<192x4xf32> to vector<128x4xf32>
    %30 = tpu.concatenate %21, %22, %23, %24, %25, %26, %27, %28, %29 in 1 : vector<128x4xf32>, vector<128x4xf32>, vector<128x4xf32>, vector<128x4xf32>, vector<128x4xf32>, vector<128x4xf32>, vector<128x4xf32>, vector<128x4xf32>, vector<128x4xf32> -> vector<128x36xf32>
    %31 = arith.truncf %30 : vector<128x36xf32> to vector<128x36xbf16>
    %c0_22 = arith.constant 0 : index
    %c0_23 = arith.constant 0 : index
    %32 = vector.load %arg2[%c0_22, %c0_23] : memref<36x128xbf16, #tpu.memory_space<vmem>>, vector<36x128xbf16>
    %cst_24 = arith.constant dense<0.000000e+00> : vector<128x128xf32>
    %33 = tpu.matmul %31, %32, %cst_24 {dimension_numbers = #tpu.dot_dimension_numbers<[1], [0], [0], [1], [0, 0, 1, 1], [], []>} : vector<128x36xbf16>, vector<36x128xbf16>, vector<128x128xf32> -> vector<128x128xf32>
    %34 = vector.broadcast %10 : vector<1x128xf32> to vector<128x128xf32>
    %35 = arith.mulf %33, %34 : vector<128x128xf32>
    %36 = vector.broadcast %11 : vector<1x128xf32> to vector<128x128xf32>
    %37 = arith.addf %35, %36 : vector<128x128xf32>
    %cst_25 = arith.constant 0.000000e+00 : f32
    %38 = vector.broadcast %cst_25 : f32 to vector<128x128xf32>
    %39 = arith.maximumf %37, %38 : vector<128x128xf32>
    %40 = vector.shape_cast %39 : vector<128x128xf32> to vector<8x16x128xf32>
    %41 = vector.extract_strided_slice %40 {offsets = [0, 0, 0], sizes = [8, 8, 128], strides = [1, 1, 1]} : vector<8x16x128xf32> to vector<8x8x128xf32>
    %c0_26 = arith.constant 0 : index
    %c0_27 = arith.constant 0 : index
    %42 = vector.load %arg6[%c0_26, %c0_27] : memref<1x128xf32, #tpu.memory_space<vmem>>, vector<1x128xf32>
    %c0_28 = arith.constant 0 : index
    %c0_29 = arith.constant 0 : index
    %43 = vector.load %arg7[%c0_28, %c0_29] : memref<1x128xf32, #tpu.memory_space<vmem>>, vector<1x128xf32>
    %cst_30 = arith.constant 0.000000e+00 : f32
    %44 = vector.broadcast %cst_30 : f32 to vector<2x16x128xf32>
    %c0_31 = arith.constant 0 : index
    %c0_32 = arith.constant 0 : index
    %c0_33 = arith.constant 0 : index
    %45 = vector.load %arg10[%c0_31, %c0_32, %c0_33] : memref<12x16x128xf32, #tpu.memory_space<vmem>>, vector<2x16x128xf32>
    tpu.vector_store %arg10[%c0_31, %c0_32, %c0_33], %44 {strides = array<i32>} : memref<12x16x128xf32, #tpu.memory_space<vmem>>, vector<2x16x128xf32>,
    %cst_34 = arith.constant 0.000000e+00 : f32
    %46 = vector.broadcast %cst_34 : f32 to vector<2x16x128xf32>
    %c10_35 = arith.constant 10 : index
    %c0_36 = arith.constant 0 : index
    %c0_37 = arith.constant 0 : index
    %47 = vector.load %arg10[%c10_35, %c0_36, %c0_37] : memref<12x16x128xf32, #tpu.memory_space<vmem>>, vector<2x16x128xf32>
    tpu.vector_store %arg10[%c10_35, %c0_36, %c0_37], %46 {strides = array<i32>} : memref<12x16x128xf32, #tpu.memory_space<vmem>>, vector<2x16x128xf32>,
    %cst_38 = arith.constant 0.000000e+00 : f32
    %48 = vector.broadcast %cst_38 : f32 to vector<8x8x128xf32>
    %c2_39 = arith.constant 2 : index
    %c8_40 = arith.constant 8 : index
    %c0_41 = arith.constant 0 : index
    %49 = vector.load %arg10[%c2_39, %c8_40, %c0_41] : memref<12x16x128xf32, #tpu.memory_space<vmem>>, vector<8x8x128xf32>
    tpu.vector_store %arg10[%c2_39, %c8_40, %c0_41], %48 {strides = array<i32>} : memref<12x16x128xf32, #tpu.memory_space<vmem>>, vector<8x8x128xf32>,
    %c2_42 = arith.constant 2 : index
    %c0_43 = arith.constant 0 : index
    %c0_44 = arith.constant 0 : index
    %50 = vector.load %arg10[%c2_42, %c0_43, %c0_44] : memref<12x16x128xf32, #tpu.memory_space<vmem>>, vector<8x8x128xf32>
    tpu.vector_store %arg10[%c2_42, %c0_43, %c0_44], %41 {strides = array<i32>} : memref<12x16x128xf32, #tpu.memory_space<vmem>>, vector<8x8x128xf32>,
    %c0_45 = arith.constant 0 : index
    %c0_46 = arith.constant 0 : index
    %c0_47 = arith.constant 0 : index
    %51 = vector.load %arg10[%c0_45, %c0_46, %c0_47] : memref<12x16x128xf32, #tpu.memory_space<vmem>>, vector<12x16x128xf32>
    %52 = vector.shape_cast %51 : vector<12x16x128xf32> to vector<192x128xf32>
    %cst_48 = arith.constant 0.000000e+00 : f32
    %53 = vector.broadcast %cst_48 : f32 to vector<128x128xf32>
    %54 = vector.extract_strided_slice %52 {offsets = [15, 0], sizes = [128, 128], strides = [1, 1]} : vector<192x128xf32> to vector<128x128xf32>
    %55 = arith.truncf %54 : vector<128x128xf32> to vector<128x128xbf16>
    %c0_49 = arith.constant 0 : index
    %c0_50 = arith.constant 0 : index
    %56 = vector.load %arg5[%c0_49, %c0_50] : memref<1152x128xbf16, #tpu.memory_space<vmem>>, vector<128x128xbf16>
    %cst_51 = arith.constant dense<0.000000e+00> : vector<128x128xf32>
    %57 = tpu.matmul %55, %56, %cst_51 {dimension_numbers = #tpu.dot_dimension_numbers<[1], [0], [0], [1], [0, 0, 1, 1], [], []>} : vector<128x128xbf16>, vector<128x128xbf16>, vector<128x128xf32> -> vector<128x128xf32>
    %58 = arith.addf %53, %57 : vector<128x128xf32>
    %59 = vector.extract_strided_slice %52 {offsets = [16, 0], sizes = [128, 128], strides = [1, 1]} : vector<192x128xf32> to vector<128x128xf32>
    %60 = arith.truncf %59 : vector<128x128xf32> to vector<128x128xbf16>
    %c128 = arith.constant 128 : index
    %c0_52 = arith.constant 0 : index
    %61 = vector.load %arg5[%c128, %c0_52] : memref<1152x128xbf16, #tpu.memory_space<vmem>>, vector<128x128xbf16>
    %cst_53 = arith.constant dense<0.000000e+00> : vector<128x128xf32>
    %62 = tpu.matmul %60, %61, %cst_53 {dimension_numbers = #tpu.dot_dimension_numbers<[1], [0], [0], [1], [0, 0, 1, 1], [], []>} : vector<128x128xbf16>, vector<128x128xbf16>, vector<128x128xf32> -> vector<128x128xf32>
    %63 = arith.addf %58, %62 : vector<128x128xf32>
    %64 = vector.extract_strided_slice %52 {offsets = [17, 0], sizes = [128, 128], strides = [1, 1]} : vector<192x128xf32> to vector<128x128xf32>
    %65 = arith.truncf %64 : vector<128x128xf32> to vector<128x128xbf16>
    %c256 = arith.constant 256 : index
    %c0_54 = arith.constant 0 : index
    %66 = vector.load %arg5[%c256, %c0_54] : memref<1152x128xbf16, #tpu.memory_space<vmem>>, vector<128x128xbf16>
    %cst_55 = arith.constant dense<0.000000e+00> : vector<128x128xf32>
    %67 = tpu.matmul %65, %66, %cst_55 {dimension_numbers = #tpu.dot_dimension_numbers<[1], [0], [0], [1], [0, 0, 1, 1], [], []>} : vector<128x128xbf16>, vector<128x128xbf16>, vector<128x128xf32> -> vector<128x128xf32>
    %68 = arith.addf %63, %67 : vector<128x128xf32>
    %69 = vector.extract_strided_slice %52 {offsets = [31, 0], sizes = [128, 128], strides = [1, 1]} : vector<192x128xf32> to vector<128x128xf32>
    %70 = arith.truncf %69 : vector<128x128xf32> to vector<128x128xbf16>
    %c384 = arith.constant 384 : index
    %c0_56 = arith.constant 0 : index
    %71 = vector.load %arg5[%c384, %c0_56] : memref<1152x128xbf16, #tpu.memory_space<vmem>>, vector<128x128xbf16>
    %cst_57 = arith.constant dense<0.000000e+00> : vector<128x128xf32>
    %72 = tpu.matmul %70, %71, %cst_57 {dimension_numbers = #tpu.dot_dimension_numbers<[1], [0], [0], [1], [0, 0, 1, 1], [], []>} : vector<128x128xbf16>, vector<128x128xbf16>, vector<128x128xf32> -> vector<128x128xf32>
    %73 = arith.addf %68, %72 : vector<128x128xf32>
    %74 = vector.extract_strided_slice %52 {offsets = [32, 0], sizes = [128, 128], strides = [1, 1]} : vector<192x128xf32> to vector<128x128xf32>
    %75 = arith.truncf %74 : vector<128x128xf32> to vector<128x128xbf16>
    %c512 = arith.constant 512 : index
    %c0_58 = arith.constant 0 : index
    %76 = vector.load %arg5[%c512, %c0_58] : memref<1152x128xbf16, #tpu.memory_space<vmem>>, vector<128x128xbf16>
    %cst_59 = arith.constant dense<0.000000e+00> : vector<128x128xf32>
    %77 = tpu.matmul %75, %76, %cst_59 {dimension_numbers = #tpu.dot_dimension_numbers<[1], [0], [0], [1], [0, 0, 1, 1], [], []>} : vector<128x128xbf16>, vector<128x128xbf16>, vector<128x128xf32> -> vector<128x128xf32>
    %78 = arith.addf %73, %77 : vector<128x128xf32>
    %79 = vector.extract_strided_slice %52 {offsets = [33, 0], sizes = [128, 128], strides = [1, 1]} : vector<192x128xf32> to vector<128x128xf32>
    %80 = arith.truncf %79 : vector<128x128xf32> to vector<128x128xbf16>
    %c640 = arith.constant 640 : index
    %c0_60 = arith.constant 0 : index
    %81 = vector.load %arg5[%c640, %c0_60] : memref<1152x128xbf16, #tpu.memory_space<vmem>>, vector<128x128xbf16>
    %cst_61 = arith.constant dense<0.000000e+00> : vector<128x128xf32>
    %82 = tpu.matmul %80, %81, %cst_61 {dimension_numbers = #tpu.dot_dimension_numbers<[1], [0], [0], [1], [0, 0, 1, 1], [], []>} : vector<128x128xbf16>, vector<128x128xbf16>, vector<128x128xf32> -> vector<128x128xf32>
    %83 = arith.addf %78, %82 : vector<128x128xf32>
    %84 = vector.extract_strided_slice %52 {offsets = [47, 0], sizes = [128, 128], strides = [1, 1]} : vector<192x128xf32> to vector<128x128xf32>
    %85 = arith.truncf %84 : vector<128x128xf32> to vector<128x128xbf16>
    %c768 = arith.constant 768 : index
    %c0_62 = arith.constant 0 : index
    %86 = vector.load %arg5[%c768, %c0_62] : memref<1152x128xbf16, #tpu.memory_space<vmem>>, vector<128x128xbf16>
    %cst_63 = arith.constant dense<0.000000e+00> : vector<128x128xf32>
    %87 = tpu.matmul %85, %86, %cst_63 {dimension_numbers = #tpu.dot_dimension_numbers<[1], [0], [0], [1], [0, 0, 1, 1], [], []>} : vector<128x128xbf16>, vector<128x128xbf16>, vector<128x128xf32> -> vector<128x128xf32>
    %88 = arith.addf %83, %87 : vector<128x128xf32>
    %89 = vector.extract_strided_slice %52 {offsets = [48, 0], sizes = [128, 128], strides = [1, 1]} : vector<192x128xf32> to vector<128x128xf32>
    %90 = arith.truncf %89 : vector<128x128xf32> to vector<128x128xbf16>
    %c896 = arith.constant 896 : index
    %c0_64 = arith.constant 0 : index
    %91 = vector.load %arg5[%c896, %c0_64] : memref<1152x128xbf16, #tpu.memory_space<vmem>>, vector<128x128xbf16>
    %cst_65 = arith.constant dense<0.000000e+00> : vector<128x128xf32>
    %92 = tpu.matmul %90, %91, %cst_65 {dimension_numbers = #tpu.dot_dimension_numbers<[1], [0], [0], [1], [0, 0, 1, 1], [], []>} : vector<128x128xbf16>, vector<128x128xbf16>, vector<128x128xf32> -> vector<128x128xf32>
    %93 = arith.addf %88, %92 : vector<128x128xf32>
    %94 = vector.extract_strided_slice %52 {offsets = [49, 0], sizes = [128, 128], strides = [1, 1]} : vector<192x128xf32> to vector<128x128xf32>
    %95 = arith.truncf %94 : vector<128x128xf32> to vector<128x128xbf16>
    %c1024 = arith.constant 1024 : index
    %c0_66 = arith.constant 0 : index
    %96 = vector.load %arg5[%c1024, %c0_66] : memref<1152x128xbf16, #tpu.memory_space<vmem>>, vector<128x128xbf16>
    %cst_67 = arith.constant dense<0.000000e+00> : vector<128x128xf32>
    %97 = tpu.matmul %95, %96, %cst_67 {dimension_numbers = #tpu.dot_dimension_numbers<[1], [0], [0], [1], [0, 0, 1, 1], [], []>} : vector<128x128xbf16>, vector<128x128xbf16>, vector<128x128xf32> -> vector<128x128xf32>
    %98 = arith.addf %93, %97 : vector<128x128xf32>
    %99 = vector.broadcast %42 : vector<1x128xf32> to vector<128x128xf32>
    %100 = arith.mulf %98, %99 : vector<128x128xf32>
    %101 = vector.broadcast %43 : vector<1x128xf32> to vector<128x128xf32>
    %102 = arith.addf %100, %101 : vector<128x128xf32>
    %cst_68 = arith.constant 0.000000e+00 : f32
    %103 = vector.broadcast %cst_68 : f32 to vector<128x128xf32>
    %104 = arith.maximumf %102, %103 : vector<128x128xf32>
    %105 = vector.shape_cast %104 : vector<128x128xf32> to vector<8x16x128xf32>
    %106 = vector.extract_strided_slice %105 {offsets = [0, 0, 0], sizes = [8, 8, 128], strides = [1, 1, 1]} : vector<8x16x128xf32> to vector<8x8x128xf32>
    %c0_69 = arith.constant 0 : index
    %c0_70 = arith.constant 0 : index
    %c0_71 = arith.constant 0 : index
    %c0_72 = arith.constant 0 : index
    %107 = vector.load %arg8[%c0_69, %c0_70, %c0_71, %c0_72] : memref<1x8x8x128xf32, #tpu.memory_space<vmem>>, vector<1x8x8x128xf32>
    %108 = vector.shape_cast %107 : vector<1x8x8x128xf32> to vector<8x8x128xf32>
    %109 = vector.shape_cast %106 : vector<8x8x128xf32> to vector<1x8x8x128xf32>
    tpu.vector_store %arg8[%c0_69, %c0_70, %c0_71, %c0_72], %109 {strides = array<i32>} : memref<1x8x8x128xf32, #tpu.memory_space<vmem>>, vector<1x8x8x128xf32>,
    return
  }
  func.func @transform_0(%arg0: i32) -> (i32, i32, i32, i32, i32) {
    %c0_i32 = arith.constant 0 : i32
    %c0_i32_0 = arith.constant 0 : i32
    %c0_i32_1 = arith.constant 0 : i32
    %c0_i32_2 = arith.constant 0 : i32
    %c0_i32_3 = arith.constant 0 : i32
    return %arg0, %c0_i32, %c0_i32_0, %c0_i32_1, %c0_i32_2 : i32, i32, i32, i32, i32
  }
  func.func @transform_1(%arg0: i32) -> (i32, i32) {
    %c0_i32 = arith.constant 0 : i32
    %c0_i32_0 = arith.constant 0 : i32
    %c0_i32_1 = arith.constant 0 : i32
    return %c0_i32, %c0_i32_0 : i32, i32
  }
  func.func @transform_2(%arg0: i32) -> (i32, i32) {
    %c0_i32 = arith.constant 0 : i32
    %c0_i32_0 = arith.constant 0 : i32
    %c0_i32_1 = arith.constant 0 : i32
    return %c0_i32, %c0_i32_0 : i32, i32
  }
  func.func @transform_3(%arg0: i32) -> (i32, i32) {
    %c0_i32 = arith.constant 0 : i32
    %c0_i32_0 = arith.constant 0 : i32
    %c0_i32_1 = arith.constant 0 : i32
    return %c0_i32, %c0_i32_0 : i32, i32
  }
  func.func @transform_4(%arg0: i32) -> (i32, i32) {
    %c0_i32 = arith.constant 0 : i32
    %c0_i32_0 = arith.constant 0 : i32
    %c0_i32_1 = arith.constant 0 : i32
    return %c0_i32, %c0_i32_0 : i32, i32
  }
  func.func @transform_5(%arg0: i32) -> (i32, i32) {
    %c0_i32 = arith.constant 0 : i32
    %c0_i32_0 = arith.constant 0 : i32
    %c0_i32_1 = arith.constant 0 : i32
    return %c0_i32, %c0_i32_0 : i32, i32
  }
  func.func @transform_6(%arg0: i32) -> (i32, i32) {
    %c0_i32 = arith.constant 0 : i32
    %c0_i32_0 = arith.constant 0 : i32
    %c0_i32_1 = arith.constant 0 : i32
    return %c0_i32, %c0_i32_0 : i32, i32
  }
  func.func @transform_7(%arg0: i32) -> (i32, i32, i32, i32) {
    %c0_i32 = arith.constant 0 : i32
    %c0_i32_0 = arith.constant 0 : i32
    %c0_i32_1 = arith.constant 0 : i32
    %c0_i32_2 = arith.constant 0 : i32
    return %arg0, %c0_i32, %c0_i32_0, %c0_i32_1 : i32, i32, i32, i32
  }
}

</mosaic_0001>

<llo_original>
// kernel: tpu_custom_call.1
$region0: #{tpu_custom_call.1}
  #allocation0 [shape = 'u32[]', space=smem, size = 0x4, offset = 0x4, fixed_abs, tag = 'smem constant byte address 0x4 - core index']
  #allocation1 [shape = 'u32[72,128]{1,0:T(1,128)}', space=vmem, size = 0x9000, scoped, tag = 'internal scratch']
  %s0 = inlined_call_operand.hbm [shape: bf16[4,16,128], index: 0, kind: input, shape index: {}]
  %s1 = inlined_call_operand.hbm [shape: bf16[16,128], index: 1, kind: output, shape index: {}]
  %s2 = sld [smem:[#allocation0]]
  $region18: #{tpu_custom_call.1} parent=0
    _
  %s4 = ssub.s32 1, %s2
  %s5 = scalar_select 0, %s4, %s2
  $region1: #{tpu_custom_call.1} parent=0
    #allocation2 [shape = 'u8[16384]{0}', space=vmem, size = 0x4000, scoped, tag = 'input window, operand 0, single buffered']
    #allocation3 [shape = 's32[1]{0}', space=sflag, size = 0x4, scoped, tag = 'scoped memory for tpu_custom_call.1']
    #allocation4 [shape = 's32[1]{0}', space=sflag, size = 0x4, scoped, tag = 'scoped memory for tpu_custom_call.1']
    #allocation5 [shape = 'u8[4096]{0}', space=vmem, size = 0x1000, scoped, tag = 'output window, operand 0, single buffered']
    %6 = vsyncpa [#allocation3], 0
    %7 = vsyncpa [#allocation4], 0
    // Predicated region
    $region2: #{tpu_custom_call.1} parent=1 // pred_check
      _
    $region3: #{tpu_custom_call.1} parent=1 // pred_check_branch
      %9 = sbr.rel (0) target = $region5
    $region4: #{tpu_custom_call.1} parent=1 // pred_region
      %11 = vsyncadd [#allocation3], 0
      %s12 = sshll.u32 %s0, 4
      %s13 = int_to_ptr.hbm [resolvable:$true] %s12
      %s14 = sshll.u32 [#allocation2], 4
      %s15 = int_to_ptr.vmem [resolvable:$true] %s14
      %20 = dma.hbm_to_vmem [thread:$0]  %s13, 512, %s15, [#allocation3], 64, 64, 4
    $region5: #{tpu_custom_call.1} parent=1 // pred_fallthru
      _
    // Predicated region
    $region6: #{tpu_custom_call.1} parent=1 // pred_check
      _
    $region7: #{tpu_custom_call.1} parent=1 // pred_check_branch
      %22 = sbr.rel (0) target = $region9
    $region8: #{tpu_custom_call.1} parent=1 // pred_region
      %24 = dma.done [#allocation3], 512
    $region9: #{tpu_custom_call.1} parent=1 // pred_fallthru
      _
    %v25 = vld [vmem:[#allocation2] sm:$0xf]
    %v26 = vld [vmem:[#allocation2 + $0x4] sm:$0xf]
    %v27 = vld [vmem:[#allocation2 + $0x8] sm:$0xf]
    %v28 = vunpack.c.l.bf16 %v25
    %v29 = vunpack.c.l.bf16 %v26
    %v30 = vunpack.c.l.bf16 %v27
    %v32 = vrot.slane %v30, 5
    %33 = vrot.lane.b32.xlu0 %v32, 124
    %v34 = vpop.permute.xlu0 %33
    %v36 = vadd.f32 %v28, %v34
    %v37 = vadd.f32 %v29, %v34
    %v38 = vpack.c.bf16 %v36, %v36
    %v39 = vpack.c.bf16 %v37, %v37
    %vm42 = vcmask 1042432
    %vm43 = vcmask 1046532
    %vm44 = vmor %vm42, %vm43
    %v45 = vrot.slane %v38, 5
    %v46 = vrot.slane %v45, 4
    %v47 = vrot.slane %v39, 5
    %v48 = vsel %vm44, %v46, %v47
    %v49 = vrot.slane %v47, 4
    %vm52 = vcmask 519168
    %vm53 = vsmask.f32 7938
    %vm54 = vmand %vm52, %vm53
    %v55 = vld [vmem:[#allocation5] sm:$0xf]
    %v56 = vsel %vm54, %v48, %v55
    %57 = vst [vmem:[#allocation5] sm:$0xf] %v56
    %vm58 = vcmask 516096
    %vm59 = vsmask.f32 256
    %vm60 = vmand %vm58, %vm59
    %v61 = vld [vmem:[#allocation5 + $0x4] sm:$0x1]
    %v62 = vsel %vm60, %v49, %v61
    %63 = vst [vmem:[#allocation5 + $0x4] sm:$0x1] %v62
    %v66 = vrot.slane %v25, 5
    %v67 = vrot.slane %v66, 4
    %v68 = vrot.slane %v26, 5
    %v69 = vsel %vm44, %v67, %v68
    %v70 = vrot.slane %v68, 4
    %vm73 = vcmask 1043968
    %vm74 = vmand %vm73, %vm53
    %v75 = vld [vmem:[#allocation5] sm:$0xf]
    %v76 = vsel %vm74, %v69, %v75
    %77 = vst [vmem:[#allocation5] sm:$0xf] %v76
    %vm78 = vcmask 1040896
    %vm79 = vmand %vm78, %vm59
    %v80 = vld [vmem:[#allocation5 + $0x4] sm:$0x1]
    %v81 = vsel %vm79, %v70, %v80
    %82 = vst [vmem:[#allocation5 + $0x4] sm:$0x1] %v81
    // Predicated region
    $region10: #{tpu_custom_call.1} parent=1 // pred_check
      _
    $region11: #{tpu_custom_call.1} parent=1 // pred_check_branch
      %84 = sbr.rel (0) target = $region13
    $region12: #{tpu_custom_call.1} parent=1 // pred_region
      %86 = vsyncadd [#allocation4], 0
      %s87 = sshll.u32 [#allocation5], 4
      %s88 = int_to_ptr.vmem [resolvable:$true] %s87
      %s89 = sshll.u32 %s1, 4
      %s90 = int_to_ptr.hbm [resolvable:$true] %s89
      %95 = dma.vmem_to_hbm [thread:$0]  %s88, 128, %s90, [#allocation4], 64, 64, 4
    $region13: #{tpu_custom_call.1} parent=1 // pred_fallthru
      _
    // Predicated region
    $region14: #{tpu_custom_call.1} parent=1 // pred_check
      _
    $region15: #{tpu_custom_call.1} parent=1 // pred_check_branch
      %97 = sbr.rel (0) target = $region17
    $region16: #{tpu_custom_call.1} parent=1 // pred_region
      %99 = dma.done [#allocation4], 128
    $region17: #{tpu_custom_call.1} parent=1 // pred_fallthru
      _
    %100 = vsyncpa [#allocation3], 1
    %101 = vsyncpa [#allocation4], 1

// kernel: tpu_custom_call.1
$region0: #{tpu_custom_call.1}
  #allocation0 [shape = 'u32[]', space=smem, size = 0x4, offset = 0x4, fixed_abs, tag = 'smem constant byte address 0x4 - core index']
  #allocation1 [shape = 'u32[72,128]{1,0:T(1,128)}', space=vmem, size = 0x9000, scoped, tag = 'internal scratch']
  %s0 = inlined_call_operand.hbm [shape: f32[8,128], index: 0, kind: input, shape index: {}]
  %s1 = inlined_call_operand.hbm [shape: f32[8,128], index: 1, kind: output, shape index: {}]
  %s2 = sld [smem:[#allocation0]]
  $region41: #{tpu_custom_call.1} parent=0
    _
  %s4 = ssub.s32 1, %s2
  %s5 = scalar_select 0, %s4, %s2
  $region1: #{tpu_custom_call.1} parent=0
    #allocation2 [shape = 'u8[4096]{0}', space=vmem, size = 0x1000, scoped, tag = 'input window, operand 0, single buffered']
    #allocation3 [shape = 's32[2]{0}', space=sflag, size = 0x8, scoped, tag = 'scoped memory for tpu_custom_call.1']
    #allocation4 [shape = 's32[2]{0}', space=sflag, size = 0x8, scoped, tag = 'scoped memory for tpu_custom_call.1']
    #allocation5 [shape = 'u8[4096]{0}', space=vmem, size = 0x1000, scoped, tag = 'output window, operand 0, single buffered']
    %6 = vsyncpa [#allocation3], 0
    %7 = vsyncpa [#allocation4], 0
    loop: start=0, step=1, limit=4
    $region2: #{tpu_custom_call.1} parent=1 // loop_pre_header
      _
    $region3: #{tpu_custom_call.1} parent=1 // loop_header
      %s9 = sphi 0, %s13
      %p10 = scmp.ge.s32.totalorder %s9, 4
      %s17 = sphi 0, %s17
      %s19 = sphi 0, %s17
      %s20 = sphi 0, %s19
      %s34 = sphi 0, %s20
      %s38 = sphi 0, %s38
      %s40 = sphi 0, %s38
      %s41 = sphi 0, %s40
      %s55 = sphi 0, %s41
    $region4: #{tpu_custom_call.1} parent=1 // loop_header_branch
      %12 = sbr.rel (%p10) target = $region8
    $region5: #{tpu_custom_call.1} parent=1 // loop_body
      %s14 = ssub.s32 %s9, 1
      %s15 = ssub.s32 %s9, 2
      %s16 = sadd.s32 %s9, 1
      %s18 = sadd.s32 %s17, 1
      %p21 = scmp.eq.s32.totalorder %s9, 1
      %p22 = scmp.ne.s32.totalorder %s17, %s19
      %p23 = scmp.eq.s32.totalorder %s9, 0
      %p24 = por %p22, %p23
      %p25 = scmp.ne.s32.totalorder %s17, %s19
      %p26 = scmp.eq.s32.totalorder %s14, 1
      %p27 = por %p25, %p26
      %p28 = scmp.ne.s32.totalorder %s19, %s20
      %p29 = scmp.eq.s32.totalorder %s14, 0
      %p30 = por %p28, %p29
      %p31 = scmp.ne.s32.totalorder %s19, %s20
      %p32 = scmp.eq.s32.totalorder %s15, 1
      %p33 = por %p31, %p32
      %p35 = scmp.ne.s32.totalorder %s20, %s34
      %p36 = scmp.eq.s32.totalorder %s15, 0
      %p37 = por %p35, %p36
      %s39 = sadd.s32 %s38, 1
      %p42 = scmp.eq.s32.totalorder %s9, 1
      %p43 = scmp.ne.s32.totalorder %s38, %s40
      %p44 = scmp.eq.s32.totalorder %s9, 0
      %p45 = por %p43, %p44
      %p46 = scmp.ne.s32.totalorder %s38, %s40
      %p47 = scmp.eq.s32.totalorder %s14, 1
      %p48 = por %p46, %p47
      %p49 = scmp.ne.s32.totalorder %s40, %s41
      %p50 = scmp.eq.s32.totalorder %s14, 0
      %p51 = por %p49, %p50
      %p52 = scmp.ne.s32.totalorder %s40, %s41
      %p53 = scmp.eq.s32.totalorder %s15, 1
      %p54 = por %p52, %p53
      %p56 = scmp.ne.s32.totalorder %s41, %s55
      %p57 = scmp.eq.s32.totalorder %s15, 0
      %p58 = por %p56, %p57
      %p59 = scmp.le.s32.totalorder 1, %s9
      %p60 = scmp.lt.s32.totalorder %s9, 3
      %p61 = pnand %p59, %p60
      %p62 = pneg %p61
      // Predicated region
      $region9: #{tpu_custom_call.1} parent=5 // pred_check
        _
      $region10: #{tpu_custom_call.1} parent=5 // pred_check_branch
        %64 = sbr.rel (%p61) target = $region12
      $region11: #{tpu_custom_call.1} parent=5 // pred_region
        %s65 = ssub.s32 %s9, 1
        // Predicated region
        $region13: #{tpu_custom_call.1} parent=11 // pred_check
          %p66 = pneg %p30
        $region14: #{tpu_custom_call.1} parent=11 // pred_check_branch
          %68 = sbr.rel (%p66) target = $region16
        $region15: #{tpu_custom_call.1} parent=11 // pred_region
          %70 = vsyncadd [#allocation3], 0
          %s72 = sshll.u32 %s0, 4
          %s73 = int_to_ptr.hbm [resolvable:$true] %s72
          %s74 = sshll.u32 [#allocation2], 4
          %s75 = int_to_ptr.vmem [resolvable:$true] %s74
          %77 = dma.hbm_to_vmem [thread:$0]  %s73, 128, %s75, [#allocation3]
        $region16: #{tpu_custom_call.1} parent=11 // pred_fallthru
          _
      $region12: #{tpu_custom_call.1} parent=5 // pred_fallthru
        _
      %p78 = scmp.lt.s32.totalorder %s9, 2
      // Predicated region
      $region17: #{tpu_custom_call.1} parent=5 // pred_check
        %p79 = pneg %p78
      $region18: #{tpu_custom_call.1} parent=5 // pred_check_branch
        %81 = sbr.rel (%p79) target = $region20
      $region19: #{tpu_custom_call.1} parent=5 // pred_region
        _
      $region20: #{tpu_custom_call.1} parent=5 // pred_fallthru
        _
      %p82 = scmp.le.s32.totalorder 1, %s9
      %p83 = scmp.lt.s32.totalorder %s9, 3
      %p84 = pnand %p82, %p83
      %p85 = pneg %p84
      // Predicated region
      $region21: #{tpu_custom_call.1} parent=5 // pred_check
        _
      $region22: #{tpu_custom_call.1} parent=5 // pred_check_branch
        %87 = sbr.rel (%p84) target = $region24
      $region23: #{tpu_custom_call.1} parent=5 // pred_region
        %s88 = ssub.s32 %s9, 1
        // Predicated region
        $region25: #{tpu_custom_call.1} parent=23 // pred_check
          %p89 = pneg %p30
        $region26: #{tpu_custom_call.1} parent=23 // pred_check_branch
          %91 = sbr.rel (%p89) target = $region28
        $region27: #{tpu_custom_call.1} parent=23 // pred_region
          %93 = dma.done [#allocation3], 128
        $region28: #{tpu_custom_call.1} parent=23 // pred_fallthru
          _
        %p94 = pneg %p30
        %p95 = pneg %p27
        %p96 = pneg %p51
        %p97 = pneg %p48
        %v98 = vld [vmem:[#allocation2] sm:$0xff]
        %v99 = vadd.f32 %v98, 1.0
        %100 = vst [vmem:[#allocation5] sm:$0xff] %v99
        // Predicated region
        $region29: #{tpu_custom_call.1} parent=23 // pred_check
          %p101 = pneg %p48
        $region30: #{tpu_custom_call.1} parent=23 // pred_check_branch
          %103 = sbr.rel (%p101) target = $region32
        $region31: #{tpu_custom_call.1} parent=23 // pred_region
          %105 = vsyncadd [#allocation4], 0
          %s107 = sshll.u32 [#allocation5], 4
          %s108 = int_to_ptr.vmem [resolvable:$true] %s107
          %s109 = sshll.u32 %s1, 4
          %s110 = int_to_ptr.hbm [resolvable:$true] %s109
          %112 = dma.vmem_to_hbm [thread:$0]  %s108, 128, %s110, [#allocation4]
        $region32: #{tpu_custom_call.1} parent=23 // pred_fallthru
          _
        // Predicated region
        $region33: #{tpu_custom_call.1} parent=23 // pred_check
          %p113 = pneg %p48
        $region34: #{tpu_custom_call.1} parent=23 // pred_check_branch
          %115 = sbr.rel (%p113) target = $region36
        $region35: #{tpu_custom_call.1} parent=23 // pred_region
          %117 = dma.done [#allocation4], 128
        $region36: #{tpu_custom_call.1} parent=23 // pred_fallthru
          _
      $region24: #{tpu_custom_call.1} parent=5 // pred_fallthru
        _
      %p118 = scmp.le.s32.totalorder 2, %s9
      // Predicated region
      $region37: #{tpu_custom_call.1} parent=5 // pred_check
        %p119 = pneg %p118
      $region38: #{tpu_custom_call.1} parent=5 // pred_check_branch
        %121 = sbr.rel (%p119) target = $region40
      $region39: #{tpu_custom_call.1} parent=5 // pred_region
        %s122 = ssub.s32 %s9, 2
      $region40: #{tpu_custom_call.1} parent=5 // pred_fallthru
        _
    $region6: #{tpu_custom_call.1} parent=1 // loop_footer
      %s13 = sadd.s32 1, %s9
    $region7: #{tpu_custom_call.1} parent=1 // loop_footer_branch
      %8 = sbr.rel target = $region3
    $region8: #{tpu_custom_call.1} parent=1 // loop_exit
      _
    %123 = vsyncpa [#allocation3], 1
    %s124 = scalar_lea.sflag [#allocation3], 1
    %125 = vsyncpa %s124, 1
    %126 = vsyncpa [#allocation4], 1
    %s127 = scalar_lea.sflag [#allocation4], 1
    %128 = vsyncpa %s127, 1

// kernel: _down_nchw_jit.1
$region0: #{_down_nchw_jit.1}
  #allocation0 [shape = 'u32[]', space=smem, size = 0x4, offset = 0x4, fixed_abs, tag = 'smem constant byte address 0x4 - core index']
  #allocation1 [shape = 'u32[72,128]{1,0:T(1,128)}', space=vmem, size = 0x9000, scoped, tag = 'internal scratch']
  #allocation2 [shape = 'f32[12,16,4]{2,1,0:T(8,128)}', space=vmem, size = 0x18000, scoped, tag = 'scratch operand']
  #allocation3 [shape = 'f32[12,16,128]{2,1,0:T(8,128)}', space=vmem, size = 0x18000, scoped, tag = 'scratch operand']
  %s0 = inlined_call_operand.vmem [shape: f32[2,8,2,8,8], index: 0, kind: input, shape index: {}]
  %s1 = inlined_call_operand.vmem [shape: bf16[36,128], index: 1, kind: input, shape index: {}]
  %s2 = inlined_call_operand.vmem [shape: f32[1,128], index: 2, kind: input, shape index: {}]
  %s3 = inlined_call_operand.vmem [shape: f32[1,128], index: 3, kind: input, shape index: {}]
  %s4 = inlined_call_operand.vmem [shape: bf16[1152,128], index: 4, kind: input, shape index: {}]
  %s5 = inlined_call_operand.vmem [shape: f32[1,128], index: 5, kind: input, shape index: {}]
  %s6 = inlined_call_operand.vmem [shape: f32[1,128], index: 6, kind: input, shape index: {}]
  %s7 = inlined_call_operand.vmem [shape: f32[2,8,8,128], index: 7, kind: output, shape index: {}]
  %s8 = sld [smem:[#allocation0]]
  $region61: #{_down_nchw_jit.1} parent=0
    _
  %s10 = ssub.s32 1, %s8
  %s11 = scalar_select 0, %s10, %s8
  loop: start=0, step=1, limit=4
  $region2: #{_down_nchw_jit.1} parent=0 // loop_pre_header
    _
  $region3: #{_down_nchw_jit.1} parent=0 // loop_header
    %s13 = sphi 0, %s17
    %p14 = scmp.ge.s32.totalorder %s13, 4
    %s23 = sphi 0, %s25
    %s26 = sphi 0, %s23
    %s27 = sphi 0, %s26
    %s43 = sphi 0, %s27
    %s47 = sphi 0, %s47
    %s49 = sphi 0, %s47
    %s50 = sphi 0, %s49
    %s64 = sphi 0, %s50
    %s68 = sphi 0, %s68
    %s70 = sphi 0, %s68
    %s71 = sphi 0, %s70
    %s85 = sphi 0, %s71
    %s89 = sphi 0, %s89
    %s91 = sphi 0, %s89
    %s92 = sphi 0, %s91
    %s106 = sphi 0, %s92
    %s110 = sphi 0, %s110
    %s112 = sphi 0, %s110
    %s113 = sphi 0, %s112
    %s127 = sphi 0, %s113
    %s131 = sphi 0, %s131
    %s133 = sphi 0, %s131
    %s134 = sphi 0, %s133
    %s148 = sphi 0, %s134
    %s152 = sphi 0, %s152
    %s154 = sphi 0, %s152
    %s155 = sphi 0, %s154
    %s169 = sphi 0, %s155
    %s175 = sphi 0, %s177
    %s178 = sphi 0, %s175
    %s179 = sphi 0, %s178
    %s195 = sphi 0, %s179
  $region4: #{_down_nchw_jit.1} parent=0 // loop_header_branch
    %16 = sbr.rel (%p14) target = $region8
  $region5: #{_down_nchw_jit.1} parent=0 // loop_body
    %s18 = ssub.s32 %s13, 1
    %s19 = ssub.s32 %s13, 2
    %s20 = sadd.s32 %s13, 1
    %s21 = ssub.s32 %s13, %s20
    %p22 = scmp.eq.s32.totalorder %s21, 0
    %s24 = sadd.s32 %s23, 1
    %s25 = scalar_select %p22, %s23, %s24
    %p28 = pneg %p22
    %p29 = scmp.eq.s32.totalorder %s13, 1
    %p30 = por %p28, %p29
    %p31 = scmp.ne.s32.totalorder %s23, %s26
    %p32 = scmp.eq.s32.totalorder %s13, 0
    %p33 = por %p31, %p32
    %p34 = scmp.ne.s32.totalorder %s23, %s26
    %p35 = scmp.eq.s32.totalorder %s18, 1
    %p36 = por %p34, %p35
    %p37 = scmp.ne.s32.totalorder %s26, %s27
    %p38 = scmp.eq.s32.totalorder %s18, 0
    %p39 = por %p37, %p38
    %p40 = scmp.ne.s32.totalorder %s26, %s27
    %p41 = scmp.eq.s32.totalorder %s19, 1
    %p42 = por %p40, %p41
    %p44 = scmp.ne.s32.totalorder %s27, %s43
    %p45 = scmp.eq.s32.totalorder %s19, 0
    %p46 = por %p44, %p45
    %s48 = sadd.s32 %s47, 1
    %p51 = scmp.eq.s32.totalorder %s13, 1
    %p52 = scmp.ne.s32.totalorder %s47, %s49
    %p53 = scmp.eq.s32.totalorder %s13, 0
    %p54 = por %p52, %p53
    %p55 = scmp.ne.s32.totalorder %s47, %s49
    %p56 = scmp.eq.s32.totalorder %s18, 1
    %p57 = por %p55, %p56
    %p58 = scmp.ne.s32.totalorder %s49, %s50
    %p59 = scmp.eq.s32.totalorder %s18, 0
    %p60 = por %p58, %p59
    %p61 = scmp.ne.s32.totalorder %s49, %s50
    %p62 = scmp.eq.s32.totalorder %s19, 1
    %p63 = por %p61, %p62
    %p65 = scmp.ne.s32.totalorder %s50, %s64
    %p66 = scmp.eq.s32.totalorder %s19, 0
    %p67 = por %p65, %p66
    %s69 = sadd.s32 %s68, 1
    %p72 = scmp.eq.s32.totalorder %s13, 1
    %p73 = scmp.ne.s32.totalorder %s68, %s70
    %p74 = scmp.eq.s32.totalorder %s13, 0
    %p75 = por %p73, %p74
    %p76 = scmp.ne.s32.totalorder %s68, %s70
    %p77 = scmp.eq.s32.totalorder %s18, 1
    %p78 = por %p76, %p77
    %p79 = scmp.ne.s32.totalorder %s70, %s71
    %p80 = scmp.eq.s32.totalorder %s18, 0
    %p81 = por %p79, %p80
    %p82 = scmp.ne.s32.totalorder %s70, %s71
    %p83 = scmp.eq.s32.totalorder %s19, 1
    %p84 = por %p82, %p83
    %p86 = scmp.ne.s32.totalorder %s71, %s85
    %p87 = scmp.eq.s32.totalorder %s19, 0
    %p88 = por %p86, %p87
    %s90 = sadd.s32 %s89, 1
    %p93 = scmp.eq.s32.totalorder %s13, 1
    %p94 = scmp.ne.s32.totalorder %s89, %s91
    %p95 = scmp.eq.s32.totalorder %s13, 0
    %p96 = por %p94, %p95
    %p97 = scmp.ne.s32.totalorder %s89, %s91
    %p98 = scmp.eq.s32.totalorder %s18, 1
    %p99 = por %p97, %p98
    %p100 = scmp.ne.s32.totalorder %s91, %s92
    %p101 = scmp.eq.s32.totalorder %s18, 0
    %p102 = por %p100, %p101
    %p103 = scmp.ne.s32.totalorder %s91, %s92
    %p104 = scmp.eq.s32.totalorder %s19, 1
    %p105 = por %p103, %p104
    %p107 = scmp.ne.s32.totalorder %s92, %s106
    %p108 = scmp.eq.s32.totalorder %s19, 0
    %p109 = por %p107, %p108
    %s111 = sadd.s32 %s110, 1
    %p114 = scmp.eq.s32.totalorder %s13, 1
    %p115 = scmp.ne.s32.totalorder %s110, %s112
    %p116 = scmp.eq.s32.totalorder %s13, 0
    %p117 = por %p115, %p116
    %p118 = scmp.ne.s32.totalorder %s110, %s112
    %p119 = scmp.eq.s32.totalorder %s18, 1
    %p120 = por %p118, %p119
    %p121 = scmp.ne.s32.totalorder %s112, %s113
    %p122 = scmp.eq.s32.totalorder %s18, 0
    %p123 = por %p121, %p122
    %p124 = scmp.ne.s32.totalorder %s112, %s113
    %p125 = scmp.eq.s32.totalorder %s19, 1
    %p126 = por %p124, %p125
    %p128 = scmp.ne.s32.totalorder %s113, %s127
    %p129 = scmp.eq.s32.totalorder %s19, 0
    %p130 = por %p128, %p129
    %s132 = sadd.s32 %s131, 1
    %p135 = scmp.eq.s32.totalorder %s13, 1
    %p136 = scmp.ne.s32.totalorder %s131, %s133
    %p137 = scmp.eq.s32.totalorder %s13, 0
    %p138 = por %p136, %p137
    %p139 = scmp.ne.s32.totalorder %s131, %s133
    %p140 = scmp.eq.s32.totalorder %s18, 1
    %p141 = por %p139, %p140
    %p142 = scmp.ne.s32.totalorder %s133, %s134
    %p143 = scmp.eq.s32.totalorder %s18, 0
    %p144 = por %p142, %p143
    %p145 = scmp.ne.s32.totalorder %s133, %s134
    %p146 = scmp.eq.s32.totalorder %s19, 1
    %p147 = por %p145, %p146
    %p149 = scmp.ne.s32.totalorder %s134, %s148
    %p150 = scmp.eq.s32.totalorder %s19, 0
    %p151 = por %p149, %p150
    %s153 = sadd.s32 %s152, 1
    %p156 = scmp.eq.s32.totalorder %s13, 1
    %p157 = scmp.ne.s32.totalorder %s152, %s154
    %p158 = scmp.eq.s32.totalorder %s13, 0
    %p159 = por %p157, %p158
    %p160 = scmp.ne.s32.totalorder %s152, %s154
    %p161 = scmp.eq.s32.totalorder %s18, 1
    %p162 = por %p160, %p161
    %p163 = scmp.ne.s32.totalorder %s154, %s155
    %p164 = scmp.eq.s32.totalorder %s18, 0
    %p165 = por %p163, %p164
    %p166 = scmp.ne.s32.totalorder %s154, %s155
    %p167 = scmp.eq.s32.totalorder %s19, 1
    %p168 = por %p166, %p167
    %p170 = scmp.ne.s32.totalorder %s155, %s169
    %p171 = scmp.eq.s32.totalorder %s19, 0
    %p172 = por %p170, %p171
    %s173 = ssub.s32 %s13, %s20
    %p174 = scmp.eq.s32.totalorder %s173, 0
    %s176 = sadd.s32 %s175, 1
    %s177 = scalar_select %p174, %s175, %s176
    %p180 = pneg %p174
    %p181 = scmp.eq.s32.totalorder %s13, 1
    %p182 = por %p180, %p181
    %p183 = scmp.ne.s32.totalorder %s175, %s178
    %p184 = scmp.eq.s32.totalorder %s13, 0
    %p185 = por %p183, %p184
    %p186 = scmp.ne.s32.totalorder %s175, %s178
    %p187 = scmp.eq.s32.totalorder %s18, 1
    %p188 = por %p186, %p187
    %p189 = scmp.ne.s32.totalorder %s178, %s179
    %p190 = scmp.eq.s32.totalorder %s18, 0
    %p191 = por %p189, %p190
    %p192 = scmp.ne.s32.totalorder %s178, %s179
    %p193 = scmp.eq.s32.totalorder %s19, 1
    %p194 = por %p192, %p193
    %p196 = scmp.ne.s32.totalorder %s179, %s195
    %p197 = scmp.eq.s32.totalorder %s19, 0
    %p198 = por %p196, %p197
    %p199 = scmp.le.s32.totalorder 1, %s13
    %p200 = scmp.lt.s32.totalorder %s13, 3
    %p201 = pnand %p199, %p200
    %p202 = pneg %p201
    // Predicated region
    $region9: #{_down_nchw_jit.1} parent=5 // pred_check
      _
    $region10: #{_down_nchw_jit.1} parent=5 // pred_check_branch
      %204 = sbr.rel (%p201) target = $region12
    $region11: #{_down_nchw_jit.1} parent=5 // pred_region
      %s205 = ssub.s32 %s13, 1
      // Predicated region
      $region13: #{_down_nchw_jit.1} parent=11 // pred_check
        %p206 = pneg %p60
      $region14: #{_down_nchw_jit.1} parent=11 // pred_check_branch
        %208 = sbr.rel (%p206) target = $region16
      $region15: #{_down_nchw_jit.1} parent=11 // pred_region
        _
      $region16: #{_down_nchw_jit.1} parent=11 // pred_fallthru
        _
      // Predicated region
      $region17: #{_down_nchw_jit.1} parent=11 // pred_check
        %p209 = pneg %p81
      $region18: #{_down_nchw_jit.1} parent=11 // pred_check_branch
        %211 = sbr.rel (%p209) target = $region20
      $region19: #{_down_nchw_jit.1} parent=11 // pred_region
        _
      $region20: #{_down_nchw_jit.1} parent=11 // pred_fallthru
        _
      // Predicated region
      $region21: #{_down_nchw_jit.1} parent=11 // pred_check
        %p212 = pneg %p102
      $region22: #{_down_nchw_jit.1} parent=11 // pred_check_branch
        %214 = sbr.rel (%p212) target = $region24
      $region23: #{_down_nchw_jit.1} parent=11 // pred_region
        _
      $region24: #{_down_nchw_jit.1} parent=11 // pred_fallthru
        _
      // Predicated region
      $region25: #{_down_nchw_jit.1} parent=11 // pred_check
        %p215 = pneg %p123
      $region26: #{_down_nchw_jit.1} parent=11 // pred_check_branch
        %217 = sbr.rel (%p215) target = $region28
      $region27: #{_down_nchw_jit.1} parent=11 // pred_region
        _
      $region28: #{_down_nchw_jit.1} parent=11 // pred_fallthru
        _
      // Predicated region
      $region29: #{_down_nchw_jit.1} parent=11 // pred_check
        %p218 = pneg %p144
      $region30: #{_down_nchw_jit.1} parent=11 // pred_check_branch
        %220 = sbr.rel (%p218) target = $region32
      $region31: #{_down_nchw_jit.1} parent=11 // pred_region
        _
      $region32: #{_down_nchw_jit.1} parent=11 // pred_fallthru
        _
      // Predicated region
      $region33: #{_down_nchw_jit.1} parent=11 // pred_check
        %p221 = pneg %p165
      $region34: #{_down_nchw_jit.1} parent=11 // pred_check_branch
        %223 = sbr.rel (%p221) target = $region36
      $region35: #{_down_nchw_jit.1} parent=11 // pred_region
        _
      $region36: #{_down_nchw_jit.1} parent=11 // pred_fallthru
        _
    $region12: #{_down_nchw_jit.1} parent=5 // pred_fallthru
      _
    %p224 = scmp.lt.s32.totalorder %s13, 2
    // Predicated region
    $region37: #{_down_nchw_jit.1} parent=5 // pred_check
      %p225 = pneg %p224
    $region38: #{_down_nchw_jit.1} parent=5 // pred_check_branch
      %227 = sbr.rel (%p225) target = $region40
    $region39: #{_down_nchw_jit.1} parent=5 // pred_region
      // Predicated region
      $region41: #{_down_nchw_jit.1} parent=39 // pred_check
        %p228 = pneg %p33
      $region42: #{_down_nchw_jit.1} parent=39 // pred_check_branch
        %230 = sbr.rel (%p228) target = $region44
      $region43: #{_down_nchw_jit.1} parent=39 // pred_region
        %p231 = scmp.lt.s32.totalorder %s13, 1
        %s232 = scalar_select %p231, %s13, 1
        %s233 = smul.addr %s232, 16
        %s234 = smul.addr %s233, 8
        %s235 = scalar_lea.vmem %s0, %s234
      $region44: #{_down_nchw_jit.1} parent=39 // pred_fallthru
        _
    $region40: #{_down_nchw_jit.1} parent=5 // pred_fallthru
      _
    %p236 = scmp.le.s32.totalorder 1, %s13
    %p237 = scmp.lt.s32.totalorder %s13, 3
    %p238 = pnand %p236, %p237
    %p239 = pneg %p238
    // Predicated region
    $region45: #{_down_nchw_jit.1} parent=5 // pred_check
      _
    $region46: #{_down_nchw_jit.1} parent=5 // pred_check_branch
      %241 = sbr.rel (%p238) target = $region48
    $region47: #{_down_nchw_jit.1} parent=5 // pred_region
      %s242 = ssub.s32 %s13, 1
      %p243 = scmp.lt.s32.totalorder %s18, 1
      %s244 = scalar_select %p243, %s18, 1
      %s245 = smul.addr %s244, 16
      %s246 = smul.addr %s245, 8
      %s247 = scalar_lea.vmem %s0, %s246
      %p248 = pneg %p39
      %p249 = pneg %p36
      %p250 = pneg %p60
      %p251 = pneg %p57
      %p252 = pneg %p81
      %p253 = pneg %p78
      %p254 = pneg %p102
      %p255 = pneg %p99
      %p256 = pneg %p123
      %p257 = pneg %p120
      %p258 = pneg %p144
      %p259 = pneg %p141
      %p260 = pneg %p165
      %p261 = pneg %p162
      %p262 = pneg %p191
      %p263 = pneg %p188
      %p264 = scmp.lt.s32.totalorder %s18, 1
      %s265 = scalar_select %p264, %s18, 1
      %s266 = smul.addr %s265, 8
      %s267 = smul.addr %s266, 8
      %s268 = scalar_lea.vmem %s7, %s267
      %p269 = scmp.lt.s32.totalorder %s18, 1
      %s270 = scalar_select %p269, %s18, 1
      %s271 = smul.addr %s270, 16
      %s272 = smul.addr %s271, 8
      %s273 = scalar_lea.vmem %s0, %s272
      %p274 = scmp.lt.s32.totalorder %s18, 1
      %s275 = scalar_select %p274, %s18, 1
      %s276 = smul.addr %s275, 8
      %s277 = smul.addr %s276, 8
      %s278 = scalar_lea.vmem %s7, %s277
      %v280 = vld [vmem:[%s273] sm:$0xff]
      %v281 = vld [vmem:[%s273 + $0x8] sm:$0xff]
      %v282 = vld [vmem:[%s273 + $0x10] sm:$0xff]
      %v283 = vld [vmem:[%s273 + $0x18] sm:$0xff]
      %v284 = vld [vmem:[%s273 + $0x20] sm:$0xff]
      %v285 = vld [vmem:[%s273 + $0x28] sm:$0xff]
      %v286 = vld [vmem:[%s273 + $0x30] sm:$0xff]
      %v287 = vld [vmem:[%s273 + $0x38] sm:$0xff]
      %v288 = vld [vmem:[%s273 + $0x40] sm:$0xff]
      %v289 = vld [vmem:[%s273 + $0x48] sm:$0xff]
      %v290 = vld [vmem:[%s273 + $0x50] sm:$0xff]
      %v291 = vld [vmem:[%s273 + $0x58] sm:$0xff]
      %v292 = vld [vmem:[%s273 + $0x60] sm:$0xff]
      %v293 = vld [vmem:[%s273 + $0x68] sm:$0xff]
      %v294 = vld [vmem:[%s273 + $0x70] sm:$0xff]
      %v295 = vld [vmem:[%s273 + $0x78] sm:$0xff]
      %v296 = vmax.f32 %v280, %v281
      %v297 = vmax.f32 %v282, %v283
      %v298 = vmax.f32 %v284, %v285
      %v299 = vmax.f32 %v286, %v287
      %v300 = vmax.f32 %v288, %v289
      %v301 = vmax.f32 %v290, %v291
      %v302 = vmax.f32 %v292, %v293
      %v303 = vmax.f32 %v294, %v295
      %312 = vrot.lane.b32.xlu0 %v296, 124
      %v313 = vpop.permute.xlu0 %312
      %314 = vrot.lane.b32.xlu0 %v297, 124
      %v315 = vpop.permute.xlu0 %314
      %316 = vrot.lane.b32.xlu0 %v298, 124
      %v317 = vpop.permute.xlu0 %316
      %318 = vrot.lane.b32.xlu0 %v299, 124
      %v319 = vpop.permute.xlu0 %318
      %320 = vrot.lane.b32.xlu0 %v300, 124
      %v321 = vpop.permute.xlu0 %320
      %322 = vrot.lane.b32.xlu0 %v301, 124
      %v323 = vpop.permute.xlu0 %322
      %324 = vrot.lane.b32.xlu0 %v302, 124
      %v325 = vpop.permute.xlu0 %324
      %326 = vrot.lane.b32.xlu0 %v303, 124
      %v327 = vpop.permute.xlu0 %326
      %v336 = vmax.f32 %v296, %v313
      %v337 = vmax.f32 %v297, %v315
      %v338 = vmax.f32 %v298, %v317
      %v339 = vmax.f32 %v299, %v319
      %v340 = vmax.f32 %v300, %v321
      %v341 = vmax.f32 %v301, %v323
      %v342 = vmax.f32 %v302, %v325
      %v343 = vmax.f32 %v303, %v327
      %v344 = vld [vmem:[%s2] sm:$0x1]
      %v345 = vld [vmem:[%s3] sm:$0x1]
      %vm346 = vcmask 31744
      %347 = vst.msk [vmem:[#allocation2] sm:$0xff] %vm346, 0.0
      %348 = vst.msk [vmem:[#allocation2 + $0x8] sm:$0xff] %vm346, 0.0
      %349 = vst.msk [vmem:[#allocation2 + $0x10] sm:$0xff] %vm346, 0.0
      %350 = vst.msk [vmem:[#allocation2 + $0x18] sm:$0xff] %vm346, 0.0
      %s351 = scalar_lea.vmem [#allocation2], 160
      %352 = vst.msk [vmem:[%s351] sm:$0xff] %vm346, 0.0
      %353 = vst.msk [vmem:[%s351 + $0x8] sm:$0xff] %vm346, 0.0
      %354 = vst.msk [vmem:[%s351 + $0x10] sm:$0xff] %vm346, 0.0
      %355 = vst.msk [vmem:[%s351 + $0x18] sm:$0xff] %vm346, 0.0
      %s356 = scalar_lea.vmem [#allocation2], 32
      %357 = vst.msk [vmem:[%s356 + $0x8] sm:$0xff] %vm346, 0.0
      %358 = vst.msk [vmem:[%s356 + $0x18] sm:$0xff] %vm346, 0.0
      %359 = vst.msk [vmem:[%s356 + $0x28] sm:$0xff] %vm346, 0.0
      %360 = vst.msk [vmem:[%s356 + $0x38] sm:$0xff] %vm346, 0.0
      %361 = vst.msk [vmem:[%s356 + $0x48] sm:$0xff] %vm346, 0.0
      %362 = vst.msk [vmem:[%s356 + $0x58] sm:$0xff] %vm346, 0.0
      %363 = vst.msk [vmem:[%s356 + $0x68] sm:$0xff] %vm346, 0.0
      %364 = vst.msk [vmem:[%s356 + $0x78] sm:$0xff] %vm346, 0.0
      %365 = vst.msk [vmem:[%s356] sm:$0xff] %vm346, %v336
      %366 = vst.msk [vmem:[%s356 + $0x10] sm:$0xff] %vm346, %v337
      %367 = vst.msk [vmem:[%s356 + $0x20] sm:$0xff] %vm346, %v338
      %368 = vst.msk [vmem:[%s356 + $0x30] sm:$0xff] %vm346, %v339
      %369 = vst.msk [vmem:[%s356 + $0x40] sm:$0xff] %vm346, %v340
      %370 = vst.msk [vmem:[%s356 + $0x50] sm:$0xff] %vm346, %v341
      %371 = vst.msk [vmem:[%s356 + $0x60] sm:$0xff] %vm346, %v342
      %372 = vst.msk [vmem:[%s356 + $0x70] sm:$0xff] %vm346, %v343
      %v373 = vld [vmem:[#allocation2 + $0x8] sm:$0xff]
      %v374 = vld [vmem:[#allocation2 + $0x10] sm:$0xff]
      %v375 = vld [vmem:[#allocation2 + $0x18] sm:$0xff]
      %v376 = vld [vmem:[#allocation2 + $0x20] sm:$0xff]
      %v377 = vld [vmem:[#allocation2 + $0x28] sm:$0xff]
      %v378 = vld [vmem:[#allocation2 + $0x30] sm:$0xff]
      %v379 = vld [vmem:[#allocation2 + $0x38] sm:$0xff]
      %v380 = vld [vmem:[#allocation2 + $0x40] sm:$0xff]
      %v381 = vld [vmem:[#allocation2 + $0x48] sm:$0xff]
      %v382 = vld [vmem:[#allocation2 + $0x50] sm:$0xff]
      %v383 = vld [vmem:[#allocation2 + $0x58] sm:$0xff]
      %v384 = vld [vmem:[#allocation2 + $0x60] sm:$0xff]
      %v385 = vld [vmem:[#allocation2 + $0x68] sm:$0xff]
      %v386 = vld [vmem:[#allocation2 + $0x70] sm:$0xff]
      %v387 = vld [vmem:[#allocation2 + $0x78] sm:$0xff]
      %v388 = vld [vmem:[#allocation2 + $0x80] sm:$0xff]
      %v389 = vld [vmem:[#allocation2 + $0x88] sm:$0xff]
      %v390 = vld [vmem:[#allocation2 + $0x90] sm:$0xff]
      %v391 = vld [vmem:[#allocation2 + $0x98] sm:$0xff]
      %v392 = vld [vmem:[#allocation2 + $0xa0] sm:$0xff]
      %v393 = vld [vmem:[#allocation2 + $0xa8] sm:$0xff]
      %v394 = vld [vmem:[#allocation2 + $0xb0] sm:$0xff]
      %vm411 = vcmask 1046528
      %v412 = vrot.slane %v374, 1
      %v413 = vrot.slane %v375, 1
      %v414 = vsel %vm411, %v412, %v413
      %v415 = vrot.slane %v376, 1
      %v416 = vsel %vm411, %v413, %v415
      %v417 = vrot.slane %v377, 1
      %v418 = vsel %vm411, %v415, %v417
      %v419 = vrot.slane %v378, 1
      %v420 = vsel %vm411, %v417, %v419
      %v421 = vrot.slane %v379, 1
      %v422 = vsel %vm411, %v419, %v421
      %v423 = vrot.slane %v380, 1
      %v424 = vsel %vm411, %v421, %v423
      %v425 = vrot.slane %v381, 1
      %v426 = vsel %vm411, %v423, %v425
      %v427 = vrot.slane %v382, 1
      %v428 = vsel %vm411, %v425, %v427
      %v429 = vrot.slane %v383, 1
      %v430 = vsel %vm411, %v427, %v429
      %v431 = vrot.slane %v384, 1
      %v432 = vsel %vm411, %v429, %v431
      %v433 = vrot.slane %v385, 1
      %v434 = vsel %vm411, %v431, %v433
      %v435 = vrot.slane %v386, 1
      %v436 = vsel %vm411, %v433, %v435
      %v437 = vrot.slane %v387, 1
      %v438 = vsel %vm411, %v435, %v437
      %v439 = vrot.slane %v388, 1
      %v440 = vsel %vm411, %v437, %v439
      %v441 = vrot.slane %v389, 1
      %v442 = vsel %vm411, %v439, %v441
      %443 = vrot.lane.b32.xlu0 %v412, 4
      %v444 = vpop.permute.xlu0 %443
      %445 = vrot.lane.b32.xlu0 %v414, 4
      %v446 = vpop.permute.xlu0 %445
      %447 = vrot.lane.b32.xlu0 %v416, 4
      %v448 = vpop.permute.xlu0 %447
      %449 = vrot.lane.b32.xlu0 %v418, 4
      %v450 = vpop.permute.xlu0 %449
      %451 = vrot.lane.b32.xlu0 %v420, 4
      %v452 = vpop.permute.xlu0 %451
      %453 = vrot.lane.b32.xlu0 %v422, 4
      %v454 = vpop.permute.xlu0 %453
      %455 = vrot.lane.b32.xlu0 %v424, 4
      %v456 = vpop.permute.xlu0 %455
      %457 = vrot.lane.b32.xlu0 %v426, 4
      %v458 = vpop.permute.xlu0 %457
      %459 = vrot.lane.b32.xlu0 %v428, 4
      %v460 = vpop.permute.xlu0 %459
      %461 = vrot.lane.b32.xlu0 %v430, 4
      %v462 = vpop.permute.xlu0 %461
      %463 = vrot.lane.b32.xlu0 %v432, 4
      %v464 = vpop.permute.xlu0 %463
      %465 = vrot.lane.b32.xlu0 %v434, 4
      %v466 = vpop.permute.xlu0 %465
      %467 = vrot.lane.b32.xlu0 %v436, 4
      %v468 = vpop.permute.xlu0 %467
      %469 = vrot.lane.b32.xlu0 %v438, 4
      %v470 = vpop.permute.xlu0 %469
      %471 = vrot.lane.b32.xlu0 %v440, 4
      %v472 = vpop.permute.xlu0 %471
      %473 = vrot.lane.b32.xlu0 %v442, 4
      %v474 = vpop.permute.xlu0 %473
      %475 = vrot.lane.b32.xlu0 %v441, 4
      %v476 = vpop.permute.xlu0 %475
      %vm495 = vcmask 1045504
      %v496 = vrot.slane %v374, 2
      %v497 = vrot.slane %v375, 2
      %v498 = vsel %vm495, %v496, %v497
      %v499 = vrot.slane %v376, 2
      %v500 = vsel %vm495, %v497, %v499
      %v501 = vrot.slane %v377, 2
      %v502 = vsel %vm495, %v499, %v501
      %v503 = vrot.slane %v378, 2
      %v504 = vsel %vm495, %v501, %v503
      %v505 = vrot.slane %v379, 2
      %v506 = vsel %vm495, %v503, %v505
      %v507 = vrot.slane %v380, 2
      %v508 = vsel %vm495, %v505, %v507
      %v509 = vrot.slane %v381, 2
      %v510 = vsel %vm495, %v507, %v509
      %v511 = vrot.slane %v382, 2
      %v512 = vsel %vm495, %v509, %v511
      %v513 = vrot.slane %v383, 2
      %v514 = vsel %vm495, %v511, %v513
      %v515 = vrot.slane %v384, 2
      %v516 = vsel %vm495, %v513, %v515
      %v517 = vrot.slane %v385, 2
      %v518 = vsel %vm495, %v515, %v517
      %v519 = vrot.slane %v386, 2
      %v520 = vsel %vm495, %v517, %v519
      %v521 = vrot.slane %v387, 2
      %v522 = vsel %vm495, %v519, %v521
      %v523 = vrot.slane %v388, 2
      %v524 = vsel %vm495, %v521, %v523
      %v525 = vrot.slane %v389, 2
      %v526 = vsel %vm495, %v523, %v525
      %v527 = vrot.slane %v390, 2
      %v528 = vsel %vm495, %v525, %v527
      %529 = vrot.lane.b32.xlu0 %v496, 8
      %v530 = vpop.permute.xlu0 %529
      %531 = vrot.lane.b32.xlu0 %v498, 8
      %v532 = vpop.permute.xlu0 %531
      %533 = vrot.lane.b32.xlu0 %v500, 8
      %v534 = vpop.permute.xlu0 %533
      %535 = vrot.lane.b32.xlu0 %v502, 8
      %v536 = vpop.permute.xlu0 %535
      %537 = vrot.lane.b32.xlu0 %v504, 8
      %v538 = vpop.permute.xlu0 %537
      %539 = vrot.lane.b32.xlu0 %v506, 8
      %v540 = vpop.permute.xlu0 %539
      %541 = vrot.lane.b32.xlu0 %v508, 8
      %v542 = vpop.permute.xlu0 %541
      %543 = vrot.lane.b32.xlu0 %v510, 8
      %v544 = vpop.permute.xlu0 %543
      %545 = vrot.lane.b32.xlu0 %v512, 8
      %v546 = vpop.permute.xlu0 %545
      %547 = vrot.lane.b32.xlu0 %v514, 8
      %v548 = vpop.permute.xlu0 %547
      %549 = vrot.lane.b32.xlu0 %v516, 8
      %v550 = vpop.permute.xlu0 %549
      %551 = vrot.lane.b32.xlu0 %v518, 8
      %v552 = vpop.permute.xlu0 %551
      %553 = vrot.lane.b32.xlu0 %v520, 8
      %v554 = vpop.permute.xlu0 %553
      %555 = vrot.lane.b32.xlu0 %v522, 8
      %v556 = vpop.permute.xlu0 %555
      %557 = vrot.lane.b32.xlu0 %v524, 8
      %v558 = vpop.permute.xlu0 %557
      %559 = vrot.lane.b32.xlu0 %v526, 8
      %v560 = vpop.permute.xlu0 %559
      %561 = vrot.lane.b32.xlu0 %v528, 8
      %v562 = vpop.permute.xlu0 %561
      %581 = vrot.lane.b32.xlu0 %v375, 12
      %v582 = vpop.permute.xlu0 %581
      %583 = vrot.lane.b32.xlu0 %v376, 12
      %v584 = vpop.permute.xlu0 %583
      %585 = vrot.lane.b32.xlu0 %v377, 12
      %v586 = vpop.permute.xlu0 %585
      %587 = vrot.lane.b32.xlu0 %v378, 12
      %v588 = vpop.permute.xlu0 %587
      %589 = vrot.lane.b32.xlu0 %v379, 12
      %v590 = vpop.permute.xlu0 %589
      %591 = vrot.lane.b32.xlu0 %v380, 12
      %v592 = vpop.permute.xlu0 %591
      %593 = vrot.lane.b32.xlu0 %v381, 12
      %v594 = vpop.permute.xlu0 %593
      %595 = vrot.lane.b32.xlu0 %v382, 12
      %v596 = vpop.permute.xlu0 %595
      %597 = vrot.lane.b32.xlu0 %v383, 12
      %v598 = vpop.permute.xlu0 %597
      %599 = vrot.lane.b32.xlu0 %v384, 12
      %v600 = vpop.permute.xlu0 %599
      %601 = vrot.lane.b32.xlu0 %v385, 12
      %v602 = vpop.permute.xlu0 %601
      %603 = vrot.lane.b32.xlu0 %v386, 12
      %v604 = vpop.permute.xlu0 %603
      %605 = vrot.lane.b32.xlu0 %v387, 12
      %v606 = vpop.permute.xlu0 %605
      %607 = vrot.lane.b32.xlu0 %v388, 12
      %v608 = vpop.permute.xlu0 %607
      %609 = vrot.lane.b32.xlu0 %v389, 12
      %v610 = vpop.permute.xlu0 %609
      %611 = vrot.lane.b32.xlu0 %v390, 12
      %v612 = vpop.permute.xlu0 %611
      %613 = vrot.lane.b32.xlu0 %v391, 12
      %v614 = vpop.permute.xlu0 %613
      %v632 = vrot.slane %v390, 1
      %v633 = vsel %vm411, %v441, %v632
      %v634 = vrot.slane %v391, 1
      %v635 = vsel %vm411, %v632, %v634
      %636 = vrot.lane.b32.xlu0 %v415, 16
      %v637 = vpop.permute.xlu0 %636
      %638 = vrot.lane.b32.xlu0 %v418, 16
      %v639 = vpop.permute.xlu0 %638
      %640 = vrot.lane.b32.xlu0 %v420, 16
      %v641 = vpop.permute.xlu0 %640
      %642 = vrot.lane.b32.xlu0 %v422, 16
      %v643 = vpop.permute.xlu0 %642
      %644 = vrot.lane.b32.xlu0 %v424, 16
      %v645 = vpop.permute.xlu0 %644
      %646 = vrot.lane.b32.xlu0 %v426, 16
      %v647 = vpop.permute.xlu0 %646
      %648 = vrot.lane.b32.xlu0 %v428, 16
      %v649 = vpop.permute.xlu0 %648
      %650 = vrot.lane.b32.xlu0 %v430, 16
      %v651 = vpop.permute.xlu0 %650
      %652 = vrot.lane.b32.xlu0 %v432, 16
      %v653 = vpop.permute.xlu0 %652
      %654 = vrot.lane.b32.xlu0 %v434, 16
      %v655 = vpop.permute.xlu0 %654
      %656 = vrot.lane.b32.xlu0 %v436, 16
      %v657 = vpop.permute.xlu0 %656
      %658 = vrot.lane.b32.xlu0 %v438, 16
      %v659 = vpop.permute.xlu0 %658
      %660 = vrot.lane.b32.xlu0 %v440, 16
      %v661 = vpop.permute.xlu0 %660
      %662 = vrot.lane.b32.xlu0 %v442, 16
      %v663 = vpop.permute.xlu0 %662
      %664 = vrot.lane.b32.xlu0 %v633, 16
      %v665 = vpop.permute.xlu0 %664
      %666 = vrot.lane.b32.xlu0 %v635, 16
      %v667 = vpop.permute.xlu0 %666
      %668 = vrot.lane.b32.xlu0 %v634, 16
      %v669 = vpop.permute.xlu0 %668
      %v688 = vrot.slane %v391, 2
      %v689 = vsel %vm495, %v527, %v688
      %v690 = vrot.slane %v392, 2
      %v691 = vsel %vm495, %v688, %v690
      %692 = vrot.lane.b32.xlu0 %v499, 20
      %v693 = vpop.permute.xlu0 %692
      %694 = vrot.lane.b32.xlu0 %v502, 20
      %v695 = vpop.permute.xlu0 %694
      %696 = vrot.lane.b32.xlu0 %v504, 20
      %v697 = vpop.permute.xlu0 %696
      %698 = vrot.lane.b32.xlu0 %v506, 20
      %v699 = vpop.permute.xlu0 %698
      %700 = vrot.lane.b32.xlu0 %v508, 20
      %v701 = vpop.permute.xlu0 %700
      %702 = vrot.lane.b32.xlu0 %v510, 20
      %v703 = vpop.permute.xlu0 %702
      %704 = vrot.lane.b32.xlu0 %v512, 20
      %v705 = vpop.permute.xlu0 %704
      %706 = vrot.lane.b32.xlu0 %v514, 20
      %v707 = vpop.permute.xlu0 %706
      %708 = vrot.lane.b32.xlu0 %v516, 20
      %v709 = vpop.permute.xlu0 %708
      %710 = vrot.lane.b32.xlu0 %v518, 20
      %v711 = vpop.permute.xlu0 %710
      %712 = vrot.lane.b32.xlu0 %v520, 20
      %v713 = vpop.permute.xlu0 %712
      %714 = vrot.lane.b32.xlu0 %v522, 20
      %v715 = vpop.permute.xlu0 %714
      %716 = vrot.lane.b32.xlu0 %v524, 20
      %v717 = vpop.permute.xlu0 %716
      %718 = vrot.lane.b32.xlu0 %v526, 20
      %v719 = vpop.permute.xlu0 %718
      %720 = vrot.lane.b32.xlu0 %v528, 20
      %v721 = vpop.permute.xlu0 %720
      %722 = vrot.lane.b32.xlu0 %v689, 20
      %v723 = vpop.permute.xlu0 %722
      %724 = vrot.lane.b32.xlu0 %v691, 20
      %v725 = vpop.permute.xlu0 %724
      %744 = vrot.lane.b32.xlu0 %v377, 24
      %v745 = vpop.permute.xlu0 %744
      %746 = vrot.lane.b32.xlu0 %v378, 24
      %v747 = vpop.permute.xlu0 %746
      %748 = vrot.lane.b32.xlu0 %v379, 24
      %v749 = vpop.permute.xlu0 %748
      %750 = vrot.lane.b32.xlu0 %v380, 24
      %v751 = vpop.permute.xlu0 %750
      %752 = vrot.lane.b32.xlu0 %v381, 24
      %v753 = vpop.permute.xlu0 %752
      %754 = vrot.lane.b32.xlu0 %v382, 24
      %v755 = vpop.permute.xlu0 %754
      %756 = vrot.lane.b32.xlu0 %v383, 24
      %v757 = vpop.permute.xlu0 %756
      %758 = vrot.lane.b32.xlu0 %v384, 24
      %v759 = vpop.permute.xlu0 %758
      %760 = vrot.lane.b32.xlu0 %v385, 24
      %v761 = vpop.permute.xlu0 %760
      %762 = vrot.lane.b32.xlu0 %v386, 24
      %v763 = vpop.permute.xlu0 %762
      %764 = vrot.lane.b32.xlu0 %v387, 24
      %v765 = vpop.permute.xlu0 %764
      %766 = vrot.lane.b32.xlu0 %v388, 24
      %v767 = vpop.permute.xlu0 %766
      %768 = vrot.lane.b32.xlu0 %v389, 24
      %v769 = vpop.permute.xlu0 %768
      %770 = vrot.lane.b32.xlu0 %v390, 24
      %v771 = vpop.permute.xlu0 %770
      %772 = vrot.lane.b32.xlu0 %v391, 24
      %v773 = vpop.permute.xlu0 %772
      %774 = vrot.lane.b32.xlu0 %v392, 24
      %v775 = vpop.permute.xlu0 %774
      %776 = vrot.lane.b32.xlu0 %v393, 24
      %v777 = vpop.permute.xlu0 %776
      %v795 = vrot.slane %v392, 1
      %v796 = vsel %vm411, %v634, %v795
      %v797 = vrot.slane %v393, 1
      %v798 = vsel %vm411, %v795, %v797
      %799 = vrot.lane.b32.xlu0 %v419, 28
      %v800 = vpop.permute.xlu0 %799
      %801 = vrot.lane.b32.xlu0 %v422, 28
      %v802 = vpop.permute.xlu0 %801
      %803 = vrot.lane.b32.xlu0 %v424, 28
      %v804 = vpop.permute.xlu0 %803
      %805 = vrot.lane.b32.xlu0 %v426, 28
      %v806 = vpop.permute.xlu0 %805
      %807 = vrot.lane.b32.xlu0 %v428, 28
      %v808 = vpop.permute.xlu0 %807
      %809 = vrot.lane.b32.xlu0 %v430, 28
      %v810 = vpop.permute.xlu0 %809
      %811 = vrot.lane.b32.xlu0 %v432, 28
      %v812 = vpop.permute.xlu0 %811
      %813 = vrot.lane.b32.xlu0 %v434, 28
      %v814 = vpop.permute.xlu0 %813
      %815 = vrot.lane.b32.xlu0 %v436, 28
      %v816 = vpop.permute.xlu0 %815
      %817 = vrot.lane.b32.xlu0 %v438, 28
      %v818 = vpop.permute.xlu0 %817
      %819 = vrot.lane.b32.xlu0 %v440, 28
      %v820 = vpop.permute.xlu0 %819
      %821 = vrot.lane.b32.xlu0 %v442, 28
      %v822 = vpop.permute.xlu0 %821
      %823 = vrot.lane.b32.xlu0 %v633, 28
      %v824 = vpop.permute.xlu0 %823
      %825 = vrot.lane.b32.xlu0 %v635, 28
      %v826 = vpop.permute.xlu0 %825
      %827 = vrot.lane.b32.xlu0 %v796, 28
      %v828 = vpop.permute.xlu0 %827
      %829 = vrot.lane.b32.xlu0 %v798, 28
      %v830 = vpop.permute.xlu0 %829
      %831 = vrot.lane.b32.xlu0 %v797, 28
      %v832 = vpop.permute.xlu0 %831
      %v851 = vrot.slane %v393, 2
      %v852 = vsel %vm495, %v690, %v851
      %v853 = vrot.slane %v394, 2
      %v854 = vsel %vm495, %v851, %v853
      %855 = vrot.lane.b32.xlu0 %v503, 32
      %v856 = vpop.permute.xlu0 %855
      %857 = vrot.lane.b32.xlu0 %v506, 32
      %v858 = vpop.permute.xlu0 %857
      %859 = vrot.lane.b32.xlu0 %v508, 32
      %v860 = vpop.permute.xlu0 %859
      %861 = vrot.lane.b32.xlu0 %v510, 32
      %v862 = vpop.permute.xlu0 %861
      %863 = vrot.lane.b32.xlu0 %v512, 32
      %v864 = vpop.permute.xlu0 %863
      %865 = vrot.lane.b32.xlu0 %v514, 32
      %v866 = vpop.permute.xlu0 %865
      %867 = vrot.lane.b32.xlu0 %v516, 32
      %v868 = vpop.permute.xlu0 %867
      %869 = vrot.lane.b32.xlu0 %v518, 32
      %v870 = vpop.permute.xlu0 %869
      %871 = vrot.lane.b32.xlu0 %v520, 32
      %v872 = vpop.permute.xlu0 %871
      %873 = vrot.lane.b32.xlu0 %v522, 32
      %v874 = vpop.permute.xlu0 %873
      %875 = vrot.lane.b32.xlu0 %v524, 32
      %v876 = vpop.permute.xlu0 %875
      %877 = vrot.lane.b32.xlu0 %v526, 32
      %v878 = vpop.permute.xlu0 %877
      %879 = vrot.lane.b32.xlu0 %v528, 32
      %v880 = vpop.permute.xlu0 %879
      %881 = vrot.lane.b32.xlu0 %v689, 32
      %v882 = vpop.permute.xlu0 %881
      %883 = vrot.lane.b32.xlu0 %v691, 32
      %v884 = vpop.permute.xlu0 %883
      %885 = vrot.lane.b32.xlu0 %v852, 32
      %v886 = vpop.permute.xlu0 %885
      %887 = vrot.lane.b32.xlu0 %v854, 32
      %v888 = vpop.permute.xlu0 %887
      %v906 = vsel %vm346, %v373, %v444
      %v907 = vsel %vm346, %v374, %v446
      %v908 = vsel %vm346, %v375, %v448
      %v909 = vsel %vm346, %v376, %v450
      %v910 = vsel %vm346, %v377, %v452
      %v911 = vsel %vm346, %v378, %v454
      %v912 = vsel %vm346, %v379, %v456
      %v913 = vsel %vm346, %v380, %v458
      %v914 = vsel %vm346, %v381, %v460
      %v915 = vsel %vm346, %v382, %v462
      %v916 = vsel %vm346, %v383, %v464
      %v917 = vsel %vm346, %v384, %v466
      %v918 = vsel %vm346, %v385, %v468
      %v919 = vsel %vm346, %v386, %v470
      %v920 = vsel %vm346, %v387, %v472
      %v921 = vsel %vm346, %v388, %v474
      %v922 = vsel %vm346, %v389, %v476
      %vm923 = vcmask 64512
      %v924 = vsel %vm923, %v906, %v530
      %v925 = vsel %vm923, %v907, %v532
      %v926 = vsel %vm923, %v908, %v534
      %v927 = vsel %vm923, %v909, %v536
      %v928 = vsel %vm923, %v910, %v538
      %v929 = vsel %vm923, %v911, %v540
      %v930 = vsel %vm923, %v912, %v542
      %v931 = vsel %vm923, %v913, %v544
      %v932 = vsel %vm923, %v914, %v546
      %v933 = vsel %vm923, %v915, %v548
      %v934 = vsel %vm923, %v916, %v550
      %v935 = vsel %vm923, %v917, %v552
      %v936 = vsel %vm923, %v918, %v554
      %v937 = vsel %vm923, %v919, %v556
      %v938 = vsel %vm923, %v920, %v558
      %v939 = vsel %vm923, %v921, %v560
      %v940 = vsel %vm923, %v922, %v562
      %vm941 = vcmask 97280
      %v942 = vsel %vm941, %v924, %v582
      %v943 = vsel %vm941, %v925, %v584
      %v944 = vsel %vm941, %v926, %v586
      %v945 = vsel %vm941, %v927, %v588
      %v946 = vsel %vm941, %v928, %v590
      %v947 = vsel %vm941, %v929, %v592
      %v948 = vsel %vm941, %v930, %v594
      %v949 = vsel %vm941, %v931, %v596
      %v950 = vsel %vm941, %v932, %v598
      %v951 = vsel %vm941, %v933, %v600
      %v952 = vsel %vm941, %v934, %v602
      %v953 = vsel %vm941, %v935, %v604
      %v954 = vsel %vm941, %v936, %v606
      %v955 = vsel %vm941, %v937, %v608
      %v956 = vsel %vm941, %v938, %v610
      %v957 = vsel %vm941, %v939, %v612
      %v958 = vsel %vm941, %v940, %v614
      %vm959 = vcmask 130048
      %v960 = vsel %vm959, %v942, %v637
      %v961 = vsel %vm959, %v943, %v639
      %v962 = vsel %vm959, %v944, %v641
      %v963 = vsel %vm959, %v945, %v643
      %v964 = vsel %vm959, %v946, %v645
      %v965 = vsel %vm959, %v947, %v647
      %v966 = vsel %vm959, %v948, %v649
      %v967 = vsel %vm959, %v949, %v651
      %v968 = vsel %vm959, %v950, %v653
      %v969 = vsel %vm959, %v951, %v655
      %v970 = vsel %vm959, %v952, %v657
      %v971 = vsel %vm959, %v953, %v659
      %v972 = vsel %vm959, %v954, %v661
      %v973 = vsel %vm959, %v955, %v663
      %v974 = vsel %vm959, %v956, %v665
      %v975 = vsel %vm959, %v957, %v667
      %v976 = vsel %vm959, %v958, %v669
      %vm977 = vcmask 162816
      %v978 = vsel %vm977, %v960, %v693
      %v979 = vsel %vm977, %v961, %v695
      %v980 = vsel %vm977, %v962, %v697
      %v981 = vsel %vm977, %v963, %v699
      %v982 = vsel %vm977, %v964, %v701
      %v983 = vsel %vm977, %v965, %v703
      %v984 = vsel %vm977, %v966, %v705
      %v985 = vsel %vm977, %v967, %v707
      %v986 = vsel %vm977, %v968, %v709
      %v987 = vsel %vm977, %v969, %v711
      %v988 = vsel %vm977, %v970, %v713
      %v989 = vsel %vm977, %v971, %v715
      %v990 = vsel %vm977, %v972, %v717
      %v991 = vsel %vm977, %v973, %v719
      %v992 = vsel %vm977, %v974, %v721
      %v993 = vsel %vm977, %v975, %v723
      %v994 = vsel %vm977, %v976, %v725
      %vm995 = vcmask 195584
      %v996 = vsel %vm995, %v978, %v745
      %v997 = vsel %vm995, %v979, %v747
      %v998 = vsel %vm995, %v980, %v749
      %v999 = vsel %vm995, %v981, %v751
      %v1000 = vsel %vm995, %v982, %v753
      %v1001 = vsel %vm995, %v983, %v755
      %v1002 = vsel %vm995, %v984, %v757
      %v1003 = vsel %vm995, %v985, %v759
      %v1004 = vsel %vm995, %v986, %v761
      %v1005 = vsel %vm995, %v987, %v763
      %v1006 = vsel %vm995, %v988, %v765
      %v1007 = vsel %vm995, %v989, %v767
      %v1008 = vsel %vm995, %v990, %v769
      %v1009 = vsel %vm995, %v991, %v771
      %v1010 = vsel %vm995, %v992, %v773
      %v1011 = vsel %vm995, %v993, %v775
      %v1012 = vsel %vm995, %v994, %v777
      %vm1013 = vcmask 228352
      %v1014 = vsel %vm1013, %v996, %v800
      %v1015 = vsel %vm1013, %v997, %v802
      %v1016 = vsel %vm1013, %v998, %v804
      %v1017 = vsel %vm1013, %v999, %v806
      %v1018 = vsel %vm1013, %v1000, %v808
      %v1019 = vsel %vm1013, %v1001, %v810
      %v1020 = vsel %vm1013, %v1002, %v812
      %v1021 = vsel %vm1013, %v1003, %v814
      %v1022 = vsel %vm1013, %v1004, %v816
      %v1023 = vsel %vm1013, %v1005, %v818
      %v1024 = vsel %vm1013, %v1006, %v820
      %v1025 = vsel %vm1013, %v1007, %v822
      %v1026 = vsel %vm1013, %v1008, %v824
      %v1027 = vsel %vm1013, %v1009, %v826
      %v1028 = vsel %vm1013, %v1010, %v828
      %v1029 = vsel %vm1013, %v1011, %v830
      %v1030 = vsel %vm1013, %v1012, %v832
      %vm1031 = vcmask 261120
      %v1032 = vsel %vm1031, %v1014, %v856
      %v1033 = vsel %vm1031, %v1015, %v858
      %v1034 = vsel %vm1031, %v1016, %v860
      %v1035 = vsel %vm1031, %v1017, %v862
      %v1036 = vsel %vm1031, %v1018, %v864
      %v1037 = vsel %vm1031, %v1019, %v866
      %v1038 = vsel %vm1031, %v1020, %v868
      %v1039 = vsel %vm1031, %v1021, %v870
      %v1040 = vsel %vm1031, %v1022, %v872
      %v1041 = vsel %vm1031, %v1023, %v874
      %v1042 = vsel %vm1031, %v1024, %v876
      %v1043 = vsel %vm1031, %v1025, %v878
      %v1044 = vsel %vm1031, %v1026, %v880
      %v1045 = vsel %vm1031, %v1027, %v882
      %v1046 = vsel %vm1031, %v1028, %v884
      %v1047 = vsel %vm1031, %v1029, %v886
      %v1048 = vsel %vm1031, %v1030, %v888
      %v1049 = vpack.c.bf16 %v1033, %v1032
      %v1050 = vpack.c.bf16 %v1035, %v1034
      %v1051 = vpack.c.bf16 %v1037, %v1036
      %v1052 = vpack.c.bf16 %v1039, %v1038
      %v1053 = vpack.c.bf16 %v1041, %v1040
      %v1054 = vpack.c.bf16 %v1043, %v1042
      %v1055 = vpack.c.bf16 %v1045, %v1044
      %v1056 = vpack.c.bf16 %v1047, %v1046
      %v1057 = vpack.c.bf16 %v1048, %v1048
      %v1058 = vld [vmem:[%s1] sm:$0xf]
      %v1059 = vld [vmem:[%s1 + $0x4] sm:$0xf]
      %v1060 = vld [vmem:[%s1 + $0x8] sm:$0xf]
      %v1061 = vld [vmem:[%s1 + $0xc] sm:$0xf]
      %v1062 = vld [vmem:[%s1 + $0x10] sm:$0x3]
      %vm1063 = vsmask.f32 4352
      %v1065 = vshrl.u32 %v1049, 16
      %v1067 = vrot.slane %v1065, 3
      %v1068 = vshll.u32 %v1049, 16
      %v1070 = vrot.slane %v1068, 4
      %v1071 = vor.u32 %v1067, %v1070
      %v1073 = vshrl.u32 %v1050, 16
      %v1075 = vrot.slane %v1073, 3
      %v1076 = vshll.u32 %v1050, 16
      %v1078 = vrot.slane %v1076, 4
      %v1079 = vor.u32 %v1075, %v1078
      %v1080 = vsel %vm1063, %v1071, %v1079
      %v1082 = vshrl.u32 %v1051, 16
      %v1084 = vrot.slane %v1082, 3
      %v1085 = vshll.u32 %v1051, 16
      %v1087 = vrot.slane %v1085, 4
      %v1088 = vor.u32 %v1084, %v1087
      %v1089 = vsel %vm1063, %v1079, %v1088
      %v1091 = vshrl.u32 %v1052, 16
      %v1093 = vrot.slane %v1091, 3
      %v1094 = vshll.u32 %v1052, 16
      %v1096 = vrot.slane %v1094, 4
      %v1097 = vor.u32 %v1093, %v1096
      %v1098 = vsel %vm1063, %v1088, %v1097
      %v1100 = vshrl.u32 %v1053, 16
      %v1102 = vrot.slane %v1100, 3
      %v1103 = vshll.u32 %v1053, 16
      %v1105 = vrot.slane %v1103, 4
      %v1106 = vor.u32 %v1102, %v1105
      %v1107 = vsel %vm1063, %v1097, %v1106
      %v1109 = vshrl.u32 %v1054, 16
      %v1111 = vrot.slane %v1109, 3
      %v1112 = vshll.u32 %v1054, 16
      %v1114 = vrot.slane %v1112, 4
      %v1115 = vor.u32 %v1111, %v1114
      %v1116 = vsel %vm1063, %v1106, %v1115
      %v1118 = vshrl.u32 %v1055, 16
      %v1120 = vrot.slane %v1118, 3
      %v1121 = vshll.u32 %v1055, 16
      %v1123 = vrot.slane %v1121, 4
      %v1124 = vor.u32 %v1120, %v1123
      %v1125 = vsel %vm1063, %v1115, %v1124
      %v1127 = vshrl.u32 %v1056, 16
      %v1129 = vrot.slane %v1127, 3
      %v1130 = vshll.u32 %v1056, 16
      %v1132 = vrot.slane %v1130, 4
      %v1133 = vor.u32 %v1129, %v1132
      %v1134 = vsel %vm1063, %v1124, %v1133
      %v1136 = vshrl.u32 %v1057, 16
      %v1138 = vrot.slane %v1136, 3
      %v1139 = vshll.u32 %v1057, 16
      %v1141 = vrot.slane %v1139, 4
      %v1142 = vor.u32 %v1138, %v1141
      %v1143 = vsel %vm1063, %v1133, %v1142
      %v1149 = vunpack.c.l.b16 %v1058
      %v1150 = vunpack.c.l.b16 %v1059
      %v1151 = vunpack.c.l.b16 %v1060
      %v1152 = vunpack.c.l.b16 %v1061
      %v1153 = vunpack.c.l.b16 %v1062
      %v1154 = vpack.c.b16 %v1150, %v1149
      %v1155 = vpack.c.b16 %v1152, %v1151
      %v1156 = vpack.c.b16 %v1153, %v1153
      %vm1159 = vcmask 293888
      %v1161 = vsel %vm1159, %v1080, 0
      %v1164 = vsel %vm1159, %v1089, 0
      %v1167 = vsel %vm1159, %v1098, 0
      %v1170 = vsel %vm1159, %v1107, 0
      %v1173 = vsel %vm1159, %v1116, 0
      %v1176 = vsel %vm1159, %v1125, 0
      %v1179 = vsel %vm1159, %v1134, 0
      %v1182 = vsel %vm1159, %v1143, 0
      %vm1184 = vcmask 1041408
      %v1186 = vsel %vm1184, %v1156, 0
      %1188 = vmatpush.bf16.msra.mxu0 0
      %1189 = vmatpush.bf16.msra.mxu0 0
      %1190 = vmatpush.bf16.msra.mxu0 0
      %1191 = vmatpush.bf16.msra.mxu0 0
      %1192 = vmatpush.bf16.msra.mxu0 0
      %1193 = vmatpush.bf16.msra.mxu0 %v1186
      %1194 = vmatpush.bf16.msra.mxu0 %v1155
      %1195 = vmatpush.bf16.msra.mxu0 %v1154
      %1196 = vmatmul.bf16.gmra.mxu0 %v1161
      %v1197 = vpop.f32.mrf.mxu0
      %v1198 = vadd.f32 0.0, %v1197
      %v1199 = vpop.f32.mrf.mxu0
      %1200 = vmatmul.bf16.gmra.mxu0 %v1164
      %v1201 = vpop.f32.mrf.mxu0
      %v1202 = vadd.f32 0.0, %v1201
      %v1203 = vpop.f32.mrf.mxu0
      %1204 = vmatmul.bf16.gmra.mxu0 %v1167
      %v1205 = vpop.f32.mrf.mxu0
      %v1206 = vadd.f32 0.0, %v1205
      %v1207 = vpop.f32.mrf.mxu0
      %1208 = vmatmul.bf16.gmra.mxu0 %v1170
      %v1209 = vpop.f32.mrf.mxu0
      %v1210 = vadd.f32 0.0, %v1209
      %v1211 = vpop.f32.mrf.mxu0
      %1212 = vmatmul.bf16.gmra.mxu0 %v1173
      %v1213 = vpop.f32.mrf.mxu0
      %v1214 = vadd.f32 0.0, %v1213
      %v1215 = vpop.f32.mrf.mxu0
      %1216 = vmatmul.bf16.gmra.mxu0 %v1176
      %v1217 = vpop.f32.mrf.mxu0
      %v1218 = vadd.f32 0.0, %v1217
      %v1219 = vpop.f32.mrf.mxu0
      %1220 = vmatmul.bf16.gmra.mxu0 %v1179
      %v1221 = vpop.f32.mrf.mxu0
      %v1222 = vadd.f32 0.0, %v1221
      %v1223 = vpop.f32.mrf.mxu0
      %1224 = vmatmul.bf16.gmra.mxu0 %v1182
      %v1225 = vpop.f32.mrf.mxu0
      %v1226 = vadd.f32 0.0, %v1225
      %v1227 = vpop.f32.mrf.mxu0
      %1228 = vdwg.mxu0
      %v1230 = vperm.slane %v344, 0
      %v1232 = vmul.f32 %v1198, %v1230
      %v1233 = vmul.f32 %v1202, %v1230
      %v1234 = vmul.f32 %v1206, %v1230
      %v1235 = vmul.f32 %v1210, %v1230
      %v1236 = vmul.f32 %v1214, %v1230
      %v1237 = vmul.f32 %v1218, %v1230
      %v1238 = vmul.f32 %v1222, %v1230
      %v1239 = vmul.f32 %v1226, %v1230
      %v1241 = vperm.slane %v345, 0
      %v1243 = vadd.f32 %v1232, %v1241
      %v1244 = vadd.f32 %v1233, %v1241
      %v1245 = vadd.f32 %v1234, %v1241
      %v1246 = vadd.f32 %v1235, %v1241
      %v1247 = vadd.f32 %v1236, %v1241
      %v1248 = vadd.f32 %v1237, %v1241
      %v1249 = vadd.f32 %v1238, %v1241
      %v1250 = vadd.f32 %v1239, %v1241
      %v1251 = vmax.f32 %v1243, 0.0
      %v1252 = vmax.f32 %v1244, 0.0
      %v1253 = vmax.f32 %v1245, 0.0
      %v1254 = vmax.f32 %v1246, 0.0
      %v1255 = vmax.f32 %v1247, 0.0
      %v1256 = vmax.f32 %v1248, 0.0
      %v1257 = vmax.f32 %v1249, 0.0
      %v1258 = vmax.f32 %v1250, 0.0
      %v1259 = vld [vmem:[%s5] sm:$0x1]
      %v1260 = vld [vmem:[%s6] sm:$0x1]
      %1261 = vst [vmem:[#allocation3] sm:$0xff] 0.0
      %1262 = vst [vmem:[#allocation3 + $0x8] sm:$0xff] 0.0
      %1263 = vst [vmem:[#allocation3 + $0x10] sm:$0xff] 0.0
      %1264 = vst [vmem:[#allocation3 + $0x18] sm:$0xff] 0.0
      %s1265 = scalar_lea.vmem [#allocation3], 160
      %1266 = vst [vmem:[%s1265] sm:$0xff] 0.0
      %1267 = vst [vmem:[%s1265 + $0x8] sm:$0xff] 0.0
      %1268 = vst [vmem:[%s1265 + $0x10] sm:$0xff] 0.0
      %1269 = vst [vmem:[%s1265 + $0x18] sm:$0xff] 0.0
      %s1270 = scalar_lea.vmem [#allocation3], 32
      %1271 = vst [vmem:[%s1270 + $0x8] sm:$0xff] 0.0
      %1272 = vst [vmem:[%s1270 + $0x18] sm:$0xff] 0.0
      %1273 = vst [vmem:[%s1270 + $0x28] sm:$0xff] 0.0
      %1274 = vst [vmem:[%s1270 + $0x38] sm:$0xff] 0.0
      %1275 = vst [vmem:[%s1270 + $0x48] sm:$0xff] 0.0
      %1276 = vst [vmem:[%s1270 + $0x58] sm:$0xff] 0.0
      %1277 = vst [vmem:[%s1270 + $0x68] sm:$0xff] 0.0
      %1278 = vst [vmem:[%s1270 + $0x78] sm:$0xff] 0.0
      %1279 = vst [vmem:[%s1270] sm:$0xff] %v1251
      %1280 = vst [vmem:[%s1270 + $0x10] sm:$0xff] %v1252
      %1281 = vst [vmem:[%s1270 + $0x20] sm:$0xff] %v1253
      %1282 = vst [vmem:[%s1270 + $0x30] sm:$0xff] %v1254
      %1283 = vst [vmem:[%s1270 + $0x40] sm:$0xff] %v1255
      %1284 = vst [vmem:[%s1270 + $0x50] sm:$0xff] %v1256
      %1285 = vst [vmem:[%s1270 + $0x60] sm:$0xff] %v1257
      %1286 = vst [vmem:[%s1270 + $0x70] sm:$0xff] %v1258
      %v1287 = vld [vmem:[#allocation3 + $0x8] sm:$0xff]
      %v1288 = vld [vmem:[#allocation3 + $0x10] sm:$0xff]
      %v1289 = vld [vmem:[#allocation3 + $0x18] sm:$0xff]
      %v1290 = vld [vmem:[#allocation3 + $0x20] sm:$0xff]
      %v1291 = vld [vmem:[#allocation3 + $0x28] sm:$0xff]
      %v1292 = vld [vmem:[#allocation3 + $0x30] sm:$0xff]
      %v1293 = vld [vmem:[#allocation3 + $0x38] sm:$0xff]
      %v1294 = vld [vmem:[#allocation3 + $0x40] sm:$0xff]
      %v1295 = vld [vmem:[#allocation3 + $0x48] sm:$0xff]
      %v1296 = vld [vmem:[#allocation3 + $0x50] sm:$0xff]
      %v1297 = vld [vmem:[#allocation3 + $0x58] sm:$0xff]
      %v1298 = vld [vmem:[#allocation3 + $0x60] sm:$0xff]
      %v1299 = vld [vmem:[#allocation3 + $0x68] sm:$0xff]
      %v1300 = vld [vmem:[#allocation3 + $0x70] sm:$0xff]
      %v1301 = vld [vmem:[#allocation3 + $0x78] sm:$0xff]
      %v1302 = vld [vmem:[#allocation3 + $0x80] sm:$0xff]
      %v1303 = vld [vmem:[#allocation3 + $0x88] sm:$0xff]
      %v1304 = vld [vmem:[#allocation3 + $0x90] sm:$0xff]
      %v1305 = vld [vmem:[#allocation3 + $0x98] sm:$0xff]
      %v1306 = vld [vmem:[#allocation3 + $0xa0] sm:$0xff]
      %v1307 = vld [vmem:[#allocation3 + $0xa8] sm:$0xff]
      %v1308 = vld [vmem:[#allocation3 + $0xb0] sm:$0xff]
      %v1309 = vpack.c.bf16 %v1288, %v1287
      %v1310 = vpack.c.bf16 %v1290, %v1289
      %v1311 = vpack.c.bf16 %v1292, %v1291
      %v1312 = vpack.c.bf16 %v1294, %v1293
      %v1313 = vpack.c.bf16 %v1296, %v1295
      %v1314 = vpack.c.bf16 %v1298, %v1297
      %v1315 = vpack.c.bf16 %v1300, %v1299
      %v1316 = vpack.c.bf16 %v1302, %v1301
      %v1317 = vpack.c.bf16 %v1303, %v1303
      %v1318 = vld [vmem:[%s4] sm:$0xf]
      %v1319 = vld [vmem:[%s4 + $0x4] sm:$0xf]
      %v1320 = vld [vmem:[%s4 + $0x8] sm:$0xf]
      %v1321 = vld [vmem:[%s4 + $0xc] sm:$0xf]
      %v1322 = vld [vmem:[%s4 + $0x10] sm:$0xf]
      %v1323 = vld [vmem:[%s4 + $0x14] sm:$0xf]
      %v1324 = vld [vmem:[%s4 + $0x18] sm:$0xf]
      %v1325 = vld [vmem:[%s4 + $0x1c] sm:$0xf]
      %v1326 = vld [vmem:[%s4 + $0x20] sm:$0xf]
      %v1327 = vld [vmem:[%s4 + $0x24] sm:$0xf]
      %v1328 = vld [vmem:[%s4 + $0x28] sm:$0xf]
      %v1329 = vld [vmem:[%s4 + $0x2c] sm:$0xf]
      %v1330 = vld [vmem:[%s4 + $0x30] sm:$0xf]
      %v1331 = vld [vmem:[%s4 + $0x34] sm:$0xf]
      %v1332 = vld [vmem:[%s4 + $0x38] sm:$0xf]
      %v1333 = vld [vmem:[%s4 + $0x3c] sm:$0xf]
      %v1334 = vpack.c.bf16 %v1289, %v1288
      %v1335 = vpack.c.bf16 %v1291, %v1290
      %v1336 = vpack.c.bf16 %v1293, %v1292
      %v1337 = vpack.c.bf16 %v1295, %v1294
      %v1338 = vpack.c.bf16 %v1297, %v1296
      %v1339 = vpack.c.bf16 %v1299, %v1298
      %v1340 = vpack.c.bf16 %v1301, %v1300
      %v1341 = vpack.c.bf16 %v1303, %v1302
      %v1342 = vld [vmem:[%s4 + $0x40] sm:$0xf]
      %v1343 = vld [vmem:[%s4 + $0x44] sm:$0xf]
      %v1344 = vld [vmem:[%s4 + $0x48] sm:$0xf]
      %v1345 = vld [vmem:[%s4 + $0x4c] sm:$0xf]
      %v1346 = vld [vmem:[%s4 + $0x50] sm:$0xf]
      %v1347 = vld [vmem:[%s4 + $0x54] sm:$0xf]
      %v1348 = vld [vmem:[%s4 + $0x58] sm:$0xf]
      %v1349 = vld [vmem:[%s4 + $0x5c] sm:$0xf]
      %v1350 = vld [vmem:[%s4 + $0x60] sm:$0xf]
      %v1351 = vld [vmem:[%s4 + $0x64] sm:$0xf]
      %v1352 = vld [vmem:[%s4 + $0x68] sm:$0xf]
      %v1353 = vld [vmem:[%s4 + $0x6c] sm:$0xf]
      %v1354 = vld [vmem:[%s4 + $0x70] sm:$0xf]
      %v1355 = vld [vmem:[%s4 + $0x74] sm:$0xf]
      %v1356 = vld [vmem:[%s4 + $0x78] sm:$0xf]
      %v1357 = vld [vmem:[%s4 + $0x7c] sm:$0xf]
      %v1374 = vunpack.c.l.b16 %v1342
      %v1375 = vunpack.c.l.b16 %v1343
      %v1376 = vunpack.c.l.b16 %v1344
      %v1377 = vunpack.c.l.b16 %v1345
      %v1378 = vunpack.c.l.b16 %v1346
      %v1379 = vunpack.c.l.b16 %v1347
      %v1380 = vunpack.c.l.b16 %v1348
      %v1381 = vunpack.c.l.b16 %v1349
      %v1382 = vunpack.c.l.b16 %v1350
      %v1383 = vunpack.c.l.b16 %v1351
      %v1384 = vunpack.c.l.b16 %v1352
      %v1385 = vunpack.c.l.b16 %v1353
      %v1386 = vunpack.c.l.b16 %v1354
      %v1387 = vunpack.c.l.b16 %v1355
      %v1388 = vunpack.c.l.b16 %v1356
      %v1389 = vunpack.c.l.b16 %v1357
      %v1390 = vpack.c.b16 %v1375, %v1374
      %v1391 = vpack.c.b16 %v1377, %v1376
      %v1392 = vpack.c.b16 %v1379, %v1378
      %v1393 = vpack.c.b16 %v1381, %v1380
      %v1394 = vpack.c.b16 %v1383, %v1382
      %v1395 = vpack.c.b16 %v1385, %v1384
      %v1396 = vpack.c.b16 %v1387, %v1386
      %v1397 = vpack.c.b16 %v1389, %v1388
      %1406 = vmatpush.bf16.msra.mxu0 %v1397
      %1407 = vmatpush.bf16.msra.mxu0 %v1396
      %1408 = vmatpush.bf16.msra.mxu0 %v1395
      %1409 = vmatpush.bf16.msra.mxu0 %v1394
      %1410 = vmatpush.bf16.msra.mxu0 %v1393
      %1411 = vmatpush.bf16.msra.mxu0 %v1392
      %1412 = vmatpush.bf16.msra.mxu0 %v1391
      %1413 = vmatpush.bf16.msra.mxu0 %v1390
      %1414 = vmatmul.bf16.gmra.mxu0 %v1334
      %v1415 = vpop.f32.mrf.mxu0
      %v1416 = vadd.f32 0.0, %v1415
      %v1417 = vpop.f32.mrf.mxu0
      %1418 = vmatmul.bf16.gmra.mxu0 %v1335
      %v1419 = vpop.f32.mrf.mxu0
      %v1420 = vadd.f32 0.0, %v1419
      %v1421 = vpop.f32.mrf.mxu0
      %1422 = vmatmul.bf16.gmra.mxu0 %v1336
      %v1423 = vpop.f32.mrf.mxu0
      %v1424 = vadd.f32 0.0, %v1423
      %v1425 = vpop.f32.mrf.mxu0
      %1426 = vmatmul.bf16.gmra.mxu0 %v1337
      %v1427 = vpop.f32.mrf.mxu0
      %v1428 = vadd.f32 0.0, %v1427
      %v1429 = vpop.f32.mrf.mxu0
      %1430 = vmatmul.bf16.gmra.mxu0 %v1338
      %v1431 = vpop.f32.mrf.mxu0
      %v1432 = vadd.f32 0.0, %v1431
      %v1433 = vpop.f32.mrf.mxu0
      %1434 = vmatmul.bf16.gmra.mxu0 %v1339
      %v1435 = vpop.f32.mrf.mxu0
      %v1436 = vadd.f32 0.0, %v1435
      %v1437 = vpop.f32.mrf.mxu0
      %1438 = vmatmul.bf16.gmra.mxu0 %v1340
      %v1439 = vpop.f32.mrf.mxu0
      %v1440 = vadd.f32 0.0, %v1439
      %v1441 = vpop.f32.mrf.mxu0
      %1442 = vmatmul.bf16.gmra.mxu0 %v1341
      %v1443 = vpop.f32.mrf.mxu0
      %v1444 = vadd.f32 0.0, %v1443
      %v1445 = vpop.f32.mrf.mxu0
      %1446 = vdwg.mxu0
      %v1448 = vshrl.u32 %v1309, 16
      %v1450 = vrot.slane %v1448, 3
      %v1451 = vshll.u32 %v1309, 16
      %v1453 = vrot.slane %v1451, 4
      %v1454 = vor.u32 %v1450, %v1453
      %v1456 = vshrl.u32 %v1310, 16
      %v1458 = vrot.slane %v1456, 3
      %v1459 = vshll.u32 %v1310, 16
      %v1461 = vrot.slane %v1459, 4
      %v1462 = vor.u32 %v1458, %v1461
      %v1463 = vsel %vm1063, %v1454, %v1462
      %v1465 = vshrl.u32 %v1311, 16
      %v1467 = vrot.slane %v1465, 3
      %v1468 = vshll.u32 %v1311, 16
      %v1470 = vrot.slane %v1468, 4
      %v1471 = vor.u32 %v1467, %v1470
      %v1472 = vsel %vm1063, %v1462, %v1471
      %v1474 = vshrl.u32 %v1312, 16
      %v1476 = vrot.slane %v1474, 3
      %v1477 = vshll.u32 %v1312, 16
      %v1479 = vrot.slane %v1477, 4
      %v1480 = vor.u32 %v1476, %v1479
      %v1481 = vsel %vm1063, %v1471, %v1480
      %v1483 = vshrl.u32 %v1313, 16
      %v1485 = vrot.slane %v1483, 3
      %v1486 = vshll.u32 %v1313, 16
      %v1488 = vrot.slane %v1486, 4
      %v1489 = vor.u32 %v1485, %v1488
      %v1490 = vsel %vm1063, %v1480, %v1489
      %v1492 = vshrl.u32 %v1314, 16
      %v1494 = vrot.slane %v1492, 3
      %v1495 = vshll.u32 %v1314, 16
      %v1497 = vrot.slane %v1495, 4
      %v1498 = vor.u32 %v1494, %v1497
      %v1499 = vsel %vm1063, %v1489, %v1498
      %v1501 = vshrl.u32 %v1315, 16
      %v1503 = vrot.slane %v1501, 3
      %v1504 = vshll.u32 %v1315, 16
      %v1506 = vrot.slane %v1504, 4
      %v1507 = vor.u32 %v1503, %v1506
      %v1508 = vsel %vm1063, %v1498, %v1507
      %v1510 = vshrl.u32 %v1316, 16
      %v1512 = vrot.slane %v1510, 3
      %v1513 = vshll.u32 %v1316, 16
      %v1515 = vrot.slane %v1513, 4
      %v1516 = vor.u32 %v1512, %v1515
      %v1517 = vsel %vm1063, %v1507, %v1516
      %v1519 = vshrl.u32 %v1317, 16
      %v1521 = vrot.slane %v1519, 3
      %v1522 = vshll.u32 %v1317, 16
      %v1524 = vrot.slane %v1522, 4
      %v1525 = vor.u32 %v1521, %v1524
      %v1526 = vsel %vm1063, %v1516, %v1525
      %v1551 = vunpack.c.l.b16 %v1318
      %v1552 = vunpack.c.l.b16 %v1319
      %v1553 = vunpack.c.l.b16 %v1320
      %v1554 = vunpack.c.l.b16 %v1321
      %v1555 = vunpack.c.l.b16 %v1322
      %v1556 = vunpack.c.l.b16 %v1323
      %v1557 = vunpack.c.l.b16 %v1324
      %v1558 = vunpack.c.l.b16 %v1325
      %v1559 = vunpack.c.l.b16 %v1326
      %v1560 = vunpack.c.l.b16 %v1327
      %v1561 = vunpack.c.l.b16 %v1328
      %v1562 = vunpack.c.l.b16 %v1329
      %v1563 = vunpack.c.l.b16 %v1330
      %v1564 = vunpack.c.l.b16 %v1331
      %v1565 = vunpack.c.l.b16 %v1332
      %v1566 = vunpack.c.l.b16 %v1333
      %v1567 = vpack.c.b16 %v1552, %v1551
      %v1568 = vpack.c.b16 %v1554, %v1553
      %v1569 = vpack.c.b16 %v1556, %v1555
      %v1570 = vpack.c.b16 %v1558, %v1557
      %v1571 = vpack.c.b16 %v1560, %v1559
      %v1572 = vpack.c.b16 %v1562, %v1561
      %v1573 = vpack.c.b16 %v1564, %v1563
      %v1574 = vpack.c.b16 %v1566, %v1565
      %1583 = vmatpush.bf16.msra.mxu0 %v1574
      %1584 = vmatpush.bf16.msra.mxu0 %v1573
      %1585 = vmatpush.bf16.msra.mxu0 %v1572
      %1586 = vmatpush.bf16.msra.mxu0 %v1571
      %1587 = vmatpush.bf16.msra.mxu0 %v1570
      %1588 = vmatpush.bf16.msra.mxu0 %v1569
      %1589 = vmatpush.bf16.msra.mxu0 %v1568
      %1590 = vmatpush.bf16.msra.mxu0 %v1567
      %1591 = vmatmul.bf16.gmra.mxu0 %v1463
      %v1592 = vpop.f32.mrf.mxu0
      %v1593 = vadd.f32 %v1416, %v1592
      %v1594 = vpop.f32.mrf.mxu0
      %1595 = vmatmul.bf16.gmra.mxu0 %v1472
      %v1596 = vpop.f32.mrf.mxu0
      %v1597 = vadd.f32 %v1420, %v1596
      %v1598 = vpop.f32.mrf.mxu0
      %1599 = vmatmul.bf16.gmra.mxu0 %v1481
      %v1600 = vpop.f32.mrf.mxu0
      %v1601 = vadd.f32 %v1424, %v1600
      %v1602 = vpop.f32.mrf.mxu0
      %1603 = vmatmul.bf16.gmra.mxu0 %v1490
      %v1604 = vpop.f32.mrf.mxu0
      %v1605 = vadd.f32 %v1428, %v1604
      %v1606 = vpop.f32.mrf.mxu0
      %1607 = vmatmul.bf16.gmra.mxu0 %v1499
      %v1608 = vpop.f32.mrf.mxu0
      %v1609 = vadd.f32 %v1432, %v1608
      %v1610 = vpop.f32.mrf.mxu0
      %1611 = vmatmul.bf16.gmra.mxu0 %v1508
      %v1612 = vpop.f32.mrf.mxu0
      %v1613 = vadd.f32 %v1436, %v1612
      %v1614 = vpop.f32.mrf.mxu0
      %1615 = vmatmul.bf16.gmra.mxu0 %v1517
      %v1616 = vpop.f32.mrf.mxu0
      %v1617 = vadd.f32 %v1440, %v1616
      %v1618 = vpop.f32.mrf.mxu0
      %1619 = vmatmul.bf16.gmra.mxu0 %v1526
      %v1620 = vpop.f32.mrf.mxu0
      %v1621 = vadd.f32 %v1444, %v1620
      %v1622 = vpop.f32.mrf.mxu0
      %1623 = vdwg.mxu0
      %v1624 = vpack.c.bf16 %v1304, %v1304
      %v1625 = vld [vmem:[%s4 + $0x80] sm:$0xf]
      %v1626 = vld [vmem:[%s4 + $0x84] sm:$0xf]
      %v1627 = vld [vmem:[%s4 + $0x88] sm:$0xf]
      %v1628 = vld [vmem:[%s4 + $0x8c] sm:$0xf]
      %v1629 = vld [vmem:[%s4 + $0x90] sm:$0xf]
      %v1630 = vld [vmem:[%s4 + $0x94] sm:$0xf]
      %v1631 = vld [vmem:[%s4 + $0x98] sm:$0xf]
      %v1632 = vld [vmem:[%s4 + $0x9c] sm:$0xf]
      %v1633 = vld [vmem:[%s4 + $0xa0] sm:$0xf]
      %v1634 = vld [vmem:[%s4 + $0xa4] sm:$0xf]
      %v1635 = vld [vmem:[%s4 + $0xa8] sm:$0xf]
      %v1636 = vld [vmem:[%s4 + $0xac] sm:$0xf]
      %v1637 = vld [vmem:[%s4 + $0xb0] sm:$0xf]
      %v1638 = vld [vmem:[%s4 + $0xb4] sm:$0xf]
      %v1639 = vld [vmem:[%s4 + $0xb8] sm:$0xf]
      %v1640 = vld [vmem:[%s4 + $0xbc] sm:$0xf]
      %vm1641 = vsmask.f32 7424
      %v1643 = vshrl.u32 %v1334, 16
      %v1645 = vshll.u32 %v1334, 16
      %v1647 = vrot.slane %v1645, 1
      %v1648 = vor.u32 %v1643, %v1647
      %v1650 = vshll.u32 %v1335, 16
      %v1652 = vrot.slane %v1650, 1
      %v1653 = vsel %vm1641, %v1648, %v1652
      %v1654 = vshrl.u32 %v1335, 16
      %v1656 = vor.u32 %v1654, %v1652
      %v1658 = vshll.u32 %v1336, 16
      %v1660 = vrot.slane %v1658, 1
      %v1661 = vsel %vm1641, %v1656, %v1660
      %v1662 = vshrl.u32 %v1336, 16
      %v1664 = vor.u32 %v1662, %v1660
      %v1666 = vshll.u32 %v1337, 16
      %v1668 = vrot.slane %v1666, 1
      %v1669 = vsel %vm1641, %v1664, %v1668
      %v1670 = vshrl.u32 %v1337, 16
      %v1672 = vor.u32 %v1670, %v1668
      %v1674 = vshll.u32 %v1338, 16
      %v1676 = vrot.slane %v1674, 1
      %v1677 = vsel %vm1641, %v1672, %v1676
      %v1678 = vshrl.u32 %v1338, 16
      %v1680 = vor.u32 %v1678, %v1676
      %v1682 = vshll.u32 %v1339, 16
      %v1684 = vrot.slane %v1682, 1
      %v1685 = vsel %vm1641, %v1680, %v1684
      %v1686 = vshrl.u32 %v1339, 16
      %v1688 = vor.u32 %v1686, %v1684
      %v1690 = vshll.u32 %v1340, 16
      %v1692 = vrot.slane %v1690, 1
      %v1693 = vsel %vm1641, %v1688, %v1692
      %v1694 = vshrl.u32 %v1340, 16
      %v1696 = vor.u32 %v1694, %v1692
      %v1698 = vshll.u32 %v1341, 16
      %v1700 = vrot.slane %v1698, 1
      %v1701 = vsel %vm1641, %v1696, %v1700
      %v1702 = vshrl.u32 %v1341, 16
      %v1704 = vor.u32 %v1702, %v1700
      %v1706 = vshll.u32 %v1624, 16
      %v1708 = vrot.slane %v1706, 1
      %v1709 = vsel %vm1641, %v1704, %v1708
      %v1734 = vunpack.c.l.b16 %v1625
      %v1735 = vunpack.c.l.b16 %v1626
      %v1736 = vunpack.c.l.b16 %v1627
      %v1737 = vunpack.c.l.b16 %v1628
      %v1738 = vunpack.c.l.b16 %v1629
      %v1739 = vunpack.c.l.b16 %v1630
      %v1740 = vunpack.c.l.b16 %v1631
      %v1741 = vunpack.c.l.b16 %v1632
      %v1742 = vunpack.c.l.b16 %v1633
      %v1743 = vunpack.c.l.b16 %v1634
      %v1744 = vunpack.c.l.b16 %v1635
      %v1745 = vunpack.c.l.b16 %v1636
      %v1746 = vunpack.c.l.b16 %v1637
      %v1747 = vunpack.c.l.b16 %v1638
      %v1748 = vunpack.c.l.b16 %v1639
      %v1749 = vunpack.c.l.b16 %v1640
      %v1750 = vpack.c.b16 %v1735, %v1734
      %v1751 = vpack.c.b16 %v1737, %v1736
      %v1752 = vpack.c.b16 %v1739, %v1738
      %v1753 = vpack.c.b16 %v1741, %v1740
      %v1754 = vpack.c.b16 %v1743, %v1742
      %v1755 = vpack.c.b16 %v1745, %v1744
      %v1756 = vpack.c.b16 %v1747, %v1746
      %v1757 = vpack.c.b16 %v1749, %v1748
      %1766 = vmatpush.bf16.msra.mxu0 %v1757
      %1767 = vmatpush.bf16.msra.mxu0 %v1756
      %1768 = vmatpush.bf16.msra.mxu0 %v1755
      %1769 = vmatpush.bf16.msra.mxu0 %v1754
      %1770 = vmatpush.bf16.msra.mxu0 %v1753
      %1771 = vmatpush.bf16.msra.mxu0 %v1752
      %1772 = vmatpush.bf16.msra.mxu0 %v1751
      %1773 = vmatpush.bf16.msra.mxu0 %v1750
      %1774 = vmatmul.bf16.gmra.mxu0 %v1653
      %v1775 = vpop.f32.mrf.mxu0
      %v1776 = vadd.f32 0.0, %v1775
      %v1777 = vpop.f32.mrf.mxu0
      %1778 = vmatmul.bf16.gmra.mxu0 %v1661
      %v1779 = vpop.f32.mrf.mxu0
      %v1780 = vadd.f32 0.0, %v1779
      %v1781 = vpop.f32.mrf.mxu0
      %1782 = vmatmul.bf16.gmra.mxu0 %v1669
      %v1783 = vpop.f32.mrf.mxu0
      %v1784 = vadd.f32 0.0, %v1783
      %v1785 = vpop.f32.mrf.mxu0
      %1786 = vmatmul.bf16.gmra.mxu0 %v1677
      %v1787 = vpop.f32.mrf.mxu0
      %v1788 = vadd.f32 0.0, %v1787
      %v1789 = vpop.f32.mrf.mxu0
      %1790 = vmatmul.bf16.gmra.mxu0 %v1685
      %v1791 = vpop.f32.mrf.mxu0
      %v1792 = vadd.f32 0.0, %v1791
      %v1793 = vpop.f32.mrf.mxu0
      %1794 = vmatmul.bf16.gmra.mxu0 %v1693
      %v1795 = vpop.f32.mrf.mxu0
      %v1796 = vadd.f32 0.0, %v1795
      %v1797 = vpop.f32.mrf.mxu0
      %1798 = vmatmul.bf16.gmra.mxu0 %v1701
      %v1799 = vpop.f32.mrf.mxu0
      %v1800 = vadd.f32 0.0, %v1799
      %v1801 = vpop.f32.mrf.mxu0
      %1802 = vmatmul.bf16.gmra.mxu0 %v1709
      %v1803 = vpop.f32.mrf.mxu0
      %v1804 = vadd.f32 0.0, %v1803
      %v1805 = vpop.f32.mrf.mxu0
      %1806 = vdwg.mxu0
      %v1807 = vadd.f32 %v1593, %v1776
      %v1808 = vadd.f32 %v1597, %v1780
      %v1809 = vadd.f32 %v1601, %v1784
      %v1810 = vadd.f32 %v1605, %v1788
      %v1811 = vadd.f32 %v1609, %v1792
      %v1812 = vadd.f32 %v1613, %v1796
      %v1813 = vadd.f32 %v1617, %v1800
      %v1814 = vadd.f32 %v1621, %v1804
      %v1815 = vpack.c.bf16 %v1304, %v1303
      %v1816 = vpack.c.bf16 %v1305, %v1305
      %v1817 = vld [vmem:[%s4 + $0xc0] sm:$0xf]
      %v1818 = vld [vmem:[%s4 + $0xc4] sm:$0xf]
      %v1819 = vld [vmem:[%s4 + $0xc8] sm:$0xf]
      %v1820 = vld [vmem:[%s4 + $0xcc] sm:$0xf]
      %v1821 = vld [vmem:[%s4 + $0xd0] sm:$0xf]
      %v1822 = vld [vmem:[%s4 + $0xd4] sm:$0xf]
      %v1823 = vld [vmem:[%s4 + $0xd8] sm:$0xf]
      %v1824 = vld [vmem:[%s4 + $0xdc] sm:$0xf]
      %v1825 = vld [vmem:[%s4 + $0xe0] sm:$0xf]
      %v1826 = vld [vmem:[%s4 + $0xe4] sm:$0xf]
      %v1827 = vld [vmem:[%s4 + $0xe8] sm:$0xf]
      %v1828 = vld [vmem:[%s4 + $0xec] sm:$0xf]
      %v1829 = vld [vmem:[%s4 + $0xf0] sm:$0xf]
      %v1830 = vld [vmem:[%s4 + $0xf4] sm:$0xf]
      %v1831 = vld [vmem:[%s4 + $0xf8] sm:$0xf]
      %v1832 = vld [vmem:[%s4 + $0xfc] sm:$0xf]
      %v1834 = vshrl.u32 %v1815, 16
      %v1836 = vrot.slane %v1834, 3
      %v1837 = vshll.u32 %v1815, 16
      %v1839 = vrot.slane %v1837, 4
      %v1840 = vor.u32 %v1836, %v1839
      %v1841 = vsel %vm1063, %v1516, %v1840
      %v1843 = vshrl.u32 %v1816, 16
      %v1845 = vrot.slane %v1843, 3
      %v1846 = vshll.u32 %v1816, 16
      %v1848 = vrot.slane %v1846, 4
      %v1849 = vor.u32 %v1845, %v1848
      %v1850 = vsel %vm1063, %v1840, %v1849
      %v1869 = vunpack.c.l.b16 %v1817
      %v1870 = vunpack.c.l.b16 %v1818
      %v1871 = vunpack.c.l.b16 %v1819
      %v1872 = vunpack.c.l.b16 %v1820
      %v1873 = vunpack.c.l.b16 %v1821
      %v1874 = vunpack.c.l.b16 %v1822
      %v1875 = vunpack.c.l.b16 %v1823
      %v1876 = vunpack.c.l.b16 %v1824
      %v1877 = vunpack.c.l.b16 %v1825
      %v1878 = vunpack.c.l.b16 %v1826
      %v1879 = vunpack.c.l.b16 %v1827
      %v1880 = vunpack.c.l.b16 %v1828
      %v1881 = vunpack.c.l.b16 %v1829
      %v1882 = vunpack.c.l.b16 %v1830
      %v1883 = vunpack.c.l.b16 %v1831
      %v1884 = vunpack.c.l.b16 %v1832
      %v1885 = vpack.c.b16 %v1870, %v1869
      %v1886 = vpack.c.b16 %v1872, %v1871
      %v1887 = vpack.c.b16 %v1874, %v1873
      %v1888 = vpack.c.b16 %v1876, %v1875
      %v1889 = vpack.c.b16 %v1878, %v1877
      %v1890 = vpack.c.b16 %v1880, %v1879
      %v1891 = vpack.c.b16 %v1882, %v1881
      %v1892 = vpack.c.b16 %v1884, %v1883
      %1901 = vmatpush.bf16.msra.mxu0 %v1892
      %1902 = vmatpush.bf16.msra.mxu0 %v1891
      %1903 = vmatpush.bf16.msra.mxu0 %v1890
      %1904 = vmatpush.bf16.msra.mxu0 %v1889
      %1905 = vmatpush.bf16.msra.mxu0 %v1888
      %1906 = vmatpush.bf16.msra.mxu0 %v1887
      %1907 = vmatpush.bf16.msra.mxu0 %v1886
      %1908 = vmatpush.bf16.msra.mxu0 %v1885
      %1909 = vmatmul.bf16.gmra.mxu0 %v1472
      %v1910 = vpop.f32.mrf.mxu0
      %v1911 = vadd.f32 0.0, %v1910
      %v1912 = vpop.f32.mrf.mxu0
      %1913 = vmatmul.bf16.gmra.mxu0 %v1481
      %v1914 = vpop.f32.mrf.mxu0
      %v1915 = vadd.f32 0.0, %v1914
      %v1916 = vpop.f32.mrf.mxu0
      %1917 = vmatmul.bf16.gmra.mxu0 %v1490
      %v1918 = vpop.f32.mrf.mxu0
      %v1919 = vadd.f32 0.0, %v1918
      %v1920 = vpop.f32.mrf.mxu0
      %1921 = vmatmul.bf16.gmra.mxu0 %v1499
      %v1922 = vpop.f32.mrf.mxu0
      %v1923 = vadd.f32 0.0, %v1922
      %v1924 = vpop.f32.mrf.mxu0
      %1925 = vmatmul.bf16.gmra.mxu0 %v1508
      %v1926 = vpop.f32.mrf.mxu0
      %v1927 = vadd.f32 0.0, %v1926
      %v1928 = vpop.f32.mrf.mxu0
      %1929 = vmatmul.bf16.gmra.mxu0 %v1517
      %v1930 = vpop.f32.mrf.mxu0
      %v1931 = vadd.f32 0.0, %v1930
      %v1932 = vpop.f32.mrf.mxu0
      %1933 = vmatmul.bf16.gmra.mxu0 %v1841
      %v1934 = vpop.f32.mrf.mxu0
      %v1935 = vadd.f32 0.0, %v1934
      %v1936 = vpop.f32.mrf.mxu0
      %1937 = vmatmul.bf16.gmra.mxu0 %v1850
      %v1938 = vpop.f32.mrf.mxu0
      %v1939 = vadd.f32 0.0, %v1938
      %v1940 = vpop.f32.mrf.mxu0
      %1941 = vdwg.mxu0
      %v1942 = vadd.f32 %v1807, %v1911
      %v1943 = vadd.f32 %v1808, %v1915
      %v1944 = vadd.f32 %v1809, %v1919
      %v1945 = vadd.f32 %v1810, %v1923
      %v1946 = vadd.f32 %v1811, %v1927
      %v1947 = vadd.f32 %v1812, %v1931
      %v1948 = vadd.f32 %v1813, %v1935
      %v1949 = vadd.f32 %v1814, %v1939
      %v1950 = vpack.c.bf16 %v1305, %v1304
      %v1951 = vld [vmem:[%s4 + $0x100] sm:$0xf]
      %v1952 = vld [vmem:[%s4 + $0x104] sm:$0xf]
      %v1953 = vld [vmem:[%s4 + $0x108] sm:$0xf]
      %v1954 = vld [vmem:[%s4 + $0x10c] sm:$0xf]
      %v1955 = vld [vmem:[%s4 + $0x110] sm:$0xf]
      %v1956 = vld [vmem:[%s4 + $0x114] sm:$0xf]
      %v1957 = vld [vmem:[%s4 + $0x118] sm:$0xf]
      %v1958 = vld [vmem:[%s4 + $0x11c] sm:$0xf]
      %v1959 = vld [vmem:[%s4 + $0x120] sm:$0xf]
      %v1960 = vld [vmem:[%s4 + $0x124] sm:$0xf]
      %v1961 = vld [vmem:[%s4 + $0x128] sm:$0xf]
      %v1962 = vld [vmem:[%s4 + $0x12c] sm:$0xf]
      %v1963 = vld [vmem:[%s4 + $0x130] sm:$0xf]
      %v1964 = vld [vmem:[%s4 + $0x134] sm:$0xf]
      %v1965 = vld [vmem:[%s4 + $0x138] sm:$0xf]
      %v1966 = vld [vmem:[%s4 + $0x13c] sm:$0xf]
      %v1983 = vunpack.c.l.b16 %v1951
      %v1984 = vunpack.c.l.b16 %v1952
      %v1985 = vunpack.c.l.b16 %v1953
      %v1986 = vunpack.c.l.b16 %v1954
      %v1987 = vunpack.c.l.b16 %v1955
      %v1988 = vunpack.c.l.b16 %v1956
      %v1989 = vunpack.c.l.b16 %v1957
      %v1990 = vunpack.c.l.b16 %v1958
      %v1991 = vunpack.c.l.b16 %v1959
      %v1992 = vunpack.c.l.b16 %v1960
      %v1993 = vunpack.c.l.b16 %v1961
      %v1994 = vunpack.c.l.b16 %v1962
      %v1995 = vunpack.c.l.b16 %v1963
      %v1996 = vunpack.c.l.b16 %v1964
      %v1997 = vunpack.c.l.b16 %v1965
      %v1998 = vunpack.c.l.b16 %v1966
      %v1999 = vpack.c.b16 %v1984, %v1983
      %v2000 = vpack.c.b16 %v1986, %v1985
      %v2001 = vpack.c.b16 %v1988, %v1987
      %v2002 = vpack.c.b16 %v1990, %v1989
      %v2003 = vpack.c.b16 %v1992, %v1991
      %v2004 = vpack.c.b16 %v1994, %v1993
      %v2005 = vpack.c.b16 %v1996, %v1995
      %v2006 = vpack.c.b16 %v1998, %v1997
      %2015 = vmatpush.bf16.msra.mxu0 %v2006
      %2016 = vmatpush.bf16.msra.mxu0 %v2005
      %2017 = vmatpush.bf16.msra.mxu0 %v2004
      %2018 = vmatpush.bf16.msra.mxu0 %v2003
      %2019 = vmatpush.bf16.msra.mxu0 %v2002
      %2020 = vmatpush.bf16.msra.mxu0 %v2001
      %2021 = vmatpush.bf16.msra.mxu0 %v2000
      %2022 = vmatpush.bf16.msra.mxu0 %v1999
      %2023 = vmatmul.bf16.gmra.mxu0 %v1335
      %v2024 = vpop.f32.mrf.mxu0
      %v2025 = vadd.f32 0.0, %v2024
      %v2026 = vpop.f32.mrf.mxu0
      %2027 = vmatmul.bf16.gmra.mxu0 %v1336
      %v2028 = vpop.f32.mrf.mxu0
      %v2029 = vadd.f32 0.0, %v2028
      %v2030 = vpop.f32.mrf.mxu0
      %2031 = vmatmul.bf16.gmra.mxu0 %v1337
      %v2032 = vpop.f32.mrf.mxu0
      %v2033 = vadd.f32 0.0, %v2032
      %v2034 = vpop.f32.mrf.mxu0
      %2035 = vmatmul.bf16.gmra.mxu0 %v1338
      %v2036 = vpop.f32.mrf.mxu0
      %v2037 = vadd.f32 0.0, %v2036
      %v2038 = vpop.f32.mrf.mxu0
      %2039 = vmatmul.bf16.gmra.mxu0 %v1339
      %v2040 = vpop.f32.mrf.mxu0
      %v2041 = vadd.f32 0.0, %v2040
      %v2042 = vpop.f32.mrf.mxu0
      %2043 = vmatmul.bf16.gmra.mxu0 %v1340
      %v2044 = vpop.f32.mrf.mxu0
      %v2045 = vadd.f32 0.0, %v2044
      %v2046 = vpop.f32.mrf.mxu0
      %2047 = vmatmul.bf16.gmra.mxu0 %v1341
      %v2048 = vpop.f32.mrf.mxu0
      %v2049 = vadd.f32 0.0, %v2048
      %v2050 = vpop.f32.mrf.mxu0
      %2051 = vmatmul.bf16.gmra.mxu0 %v1950
      %v2052 = vpop.f32.mrf.mxu0
      %v2053 = vadd.f32 0.0, %v2052
      %v2054 = vpop.f32.mrf.mxu0
      %2055 = vdwg.mxu0
      %v2056 = vadd.f32 %v1942, %v2025
      %v2057 = vadd.f32 %v1943, %v2029
      %v2058 = vadd.f32 %v1944, %v2033
      %v2059 = vadd.f32 %v1945, %v2037
      %v2060 = vadd.f32 %v1946, %v2041
      %v2061 = vadd.f32 %v1947, %v2045
      %v2062 = vadd.f32 %v1948, %v2049
      %v2063 = vadd.f32 %v1949, %v2053
      %v2064 = vpack.c.bf16 %v1306, %v1306
      %v2065 = vld [vmem:[%s4 + $0x140] sm:$0xf]
      %v2066 = vld [vmem:[%s4 + $0x144] sm:$0xf]
      %v2067 = vld [vmem:[%s4 + $0x148] sm:$0xf]
      %v2068 = vld [vmem:[%s4 + $0x14c] sm:$0xf]
      %v2069 = vld [vmem:[%s4 + $0x150] sm:$0xf]
      %v2070 = vld [vmem:[%s4 + $0x154] sm:$0xf]
      %v2071 = vld [vmem:[%s4 + $0x158] sm:$0xf]
      %v2072 = vld [vmem:[%s4 + $0x15c] sm:$0xf]
      %v2073 = vld [vmem:[%s4 + $0x160] sm:$0xf]
      %v2074 = vld [vmem:[%s4 + $0x164] sm:$0xf]
      %v2075 = vld [vmem:[%s4 + $0x168] sm:$0xf]
      %v2076 = vld [vmem:[%s4 + $0x16c] sm:$0xf]
      %v2077 = vld [vmem:[%s4 + $0x170] sm:$0xf]
      %v2078 = vld [vmem:[%s4 + $0x174] sm:$0xf]
      %v2079 = vld [vmem:[%s4 + $0x178] sm:$0xf]
      %v2080 = vld [vmem:[%s4 + $0x17c] sm:$0xf]
      %v2082 = vshll.u32 %v1950, 16
      %v2084 = vrot.slane %v2082, 1
      %v2085 = vsel %vm1641, %v1704, %v2084
      %v2086 = vshrl.u32 %v1950, 16
      %v2088 = vor.u32 %v2086, %v2084
      %v2090 = vshll.u32 %v2064, 16
      %v2092 = vrot.slane %v2090, 1
      %v2093 = vsel %vm1641, %v2088, %v2092
      %v2112 = vunpack.c.l.b16 %v2065
      %v2113 = vunpack.c.l.b16 %v2066
      %v2114 = vunpack.c.l.b16 %v2067
      %v2115 = vunpack.c.l.b16 %v2068
      %v2116 = vunpack.c.l.b16 %v2069
      %v2117 = vunpack.c.l.b16 %v2070
      %v2118 = vunpack.c.l.b16 %v2071
      %v2119 = vunpack.c.l.b16 %v2072
      %v2120 = vunpack.c.l.b16 %v2073
      %v2121 = vunpack.c.l.b16 %v2074
      %v2122 = vunpack.c.l.b16 %v2075
      %v2123 = vunpack.c.l.b16 %v2076
      %v2124 = vunpack.c.l.b16 %v2077
      %v2125 = vunpack.c.l.b16 %v2078
      %v2126 = vunpack.c.l.b16 %v2079
      %v2127 = vunpack.c.l.b16 %v2080
      %v2128 = vpack.c.b16 %v2113, %v2112
      %v2129 = vpack.c.b16 %v2115, %v2114
      %v2130 = vpack.c.b16 %v2117, %v2116
      %v2131 = vpack.c.b16 %v2119, %v2118
      %v2132 = vpack.c.b16 %v2121, %v2120
      %v2133 = vpack.c.b16 %v2123, %v2122
      %v2134 = vpack.c.b16 %v2125, %v2124
      %v2135 = vpack.c.b16 %v2127, %v2126
      %2144 = vmatpush.bf16.msra.mxu0 %v2135
      %2145 = vmatpush.bf16.msra.mxu0 %v2134
      %2146 = vmatpush.bf16.msra.mxu0 %v2133
      %2147 = vmatpush.bf16.msra.mxu0 %v2132
      %2148 = vmatpush.bf16.msra.mxu0 %v2131
      %2149 = vmatpush.bf16.msra.mxu0 %v2130
      %2150 = vmatpush.bf16.msra.mxu0 %v2129
      %2151 = vmatpush.bf16.msra.mxu0 %v2128
      %2152 = vmatmul.bf16.gmra.mxu0 %v1661
      %v2153 = vpop.f32.mrf.mxu0
      %v2154 = vadd.f32 0.0, %v2153
      %v2155 = vpop.f32.mrf.mxu0
      %2156 = vmatmul.bf16.gmra.mxu0 %v1669
      %v2157 = vpop.f32.mrf.mxu0
      %v2158 = vadd.f32 0.0, %v2157
      %v2159 = vpop.f32.mrf.mxu0
      %2160 = vmatmul.bf16.gmra.mxu0 %v1677
      %v2161 = vpop.f32.mrf.mxu0
      %v2162 = vadd.f32 0.0, %v2161
      %v2163 = vpop.f32.mrf.mxu0
      %2164 = vmatmul.bf16.gmra.mxu0 %v1685
      %v2165 = vpop.f32.mrf.mxu0
      %v2166 = vadd.f32 0.0, %v2165
      %v2167 = vpop.f32.mrf.mxu0
      %2168 = vmatmul.bf16.gmra.mxu0 %v1693
      %v2169 = vpop.f32.mrf.mxu0
      %v2170 = vadd.f32 0.0, %v2169
      %v2171 = vpop.f32.mrf.mxu0
      %2172 = vmatmul.bf16.gmra.mxu0 %v1701
      %v2173 = vpop.f32.mrf.mxu0
      %v2174 = vadd.f32 0.0, %v2173
      %v2175 = vpop.f32.mrf.mxu0
      %2176 = vmatmul.bf16.gmra.mxu0 %v2085
      %v2177 = vpop.f32.mrf.mxu0
      %v2178 = vadd.f32 0.0, %v2177
      %v2179 = vpop.f32.mrf.mxu0
      %2180 = vmatmul.bf16.gmra.mxu0 %v2093
      %v2181 = vpop.f32.mrf.mxu0
      %v2182 = vadd.f32 0.0, %v2181
      %v2183 = vpop.f32.mrf.mxu0
      %2184 = vdwg.mxu0
      %v2185 = vadd.f32 %v2056, %v2154
      %v2186 = vadd.f32 %v2057, %v2158
      %v2187 = vadd.f32 %v2058, %v2162
      %v2188 = vadd.f32 %v2059, %v2166
      %v2189 = vadd.f32 %v2060, %v2170
      %v2190 = vadd.f32 %v2061, %v2174
      %v2191 = vadd.f32 %v2062, %v2178
      %v2192 = vadd.f32 %v2063, %v2182
      %v2193 = vpack.c.bf16 %v1306, %v1305
      %v2194 = vpack.c.bf16 %v1307, %v1307
      %v2195 = vld [vmem:[%s4 + $0x180] sm:$0xf]
      %v2196 = vld [vmem:[%s4 + $0x184] sm:$0xf]
      %v2197 = vld [vmem:[%s4 + $0x188] sm:$0xf]
      %v2198 = vld [vmem:[%s4 + $0x18c] sm:$0xf]
      %v2199 = vld [vmem:[%s4 + $0x190] sm:$0xf]
      %v2200 = vld [vmem:[%s4 + $0x194] sm:$0xf]
      %v2201 = vld [vmem:[%s4 + $0x198] sm:$0xf]
      %v2202 = vld [vmem:[%s4 + $0x19c] sm:$0xf]
      %v2203 = vld [vmem:[%s4 + $0x1a0] sm:$0xf]
      %v2204 = vld [vmem:[%s4 + $0x1a4] sm:$0xf]
      %v2205 = vld [vmem:[%s4 + $0x1a8] sm:$0xf]
      %v2206 = vld [vmem:[%s4 + $0x1ac] sm:$0xf]
      %v2207 = vld [vmem:[%s4 + $0x1b0] sm:$0xf]
      %v2208 = vld [vmem:[%s4 + $0x1b4] sm:$0xf]
      %v2209 = vld [vmem:[%s4 + $0x1b8] sm:$0xf]
      %v2210 = vld [vmem:[%s4 + $0x1bc] sm:$0xf]
      %v2212 = vshrl.u32 %v2193, 16
      %v2214 = vrot.slane %v2212, 3
      %v2215 = vshll.u32 %v2193, 16
      %v2217 = vrot.slane %v2215, 4
      %v2218 = vor.u32 %v2214, %v2217
      %v2219 = vsel %vm1063, %v1840, %v2218
      %v2221 = vshrl.u32 %v2194, 16
      %v2223 = vrot.slane %v2221, 3
      %v2224 = vshll.u32 %v2194, 16
      %v2226 = vrot.slane %v2224, 4
      %v2227 = vor.u32 %v2223, %v2226
      %v2228 = vsel %vm1063, %v2218, %v2227
      %v2247 = vunpack.c.l.b16 %v2195
      %v2248 = vunpack.c.l.b16 %v2196
      %v2249 = vunpack.c.l.b16 %v2197
      %v2250 = vunpack.c.l.b16 %v2198
      %v2251 = vunpack.c.l.b16 %v2199
      %v2252 = vunpack.c.l.b16 %v2200
      %v2253 = vunpack.c.l.b16 %v2201
      %v2254 = vunpack.c.l.b16 %v2202
      %v2255 = vunpack.c.l.b16 %v2203
      %v2256 = vunpack.c.l.b16 %v2204
      %v2257 = vunpack.c.l.b16 %v2205
      %v2258 = vunpack.c.l.b16 %v2206
      %v2259 = vunpack.c.l.b16 %v2207
      %v2260 = vunpack.c.l.b16 %v2208
      %v2261 = vunpack.c.l.b16 %v2209
      %v2262 = vunpack.c.l.b16 %v2210
      %v2263 = vpack.c.b16 %v2248, %v2247
      %v2264 = vpack.c.b16 %v2250, %v2249
      %v2265 = vpack.c.b16 %v2252, %v2251
      %v2266 = vpack.c.b16 %v2254, %v2253
      %v2267 = vpack.c.b16 %v2256, %v2255
      %v2268 = vpack.c.b16 %v2258, %v2257
      %v2269 = vpack.c.b16 %v2260, %v2259
      %v2270 = vpack.c.b16 %v2262, %v2261
      %2279 = vmatpush.bf16.msra.mxu0 %v2270
      %2280 = vmatpush.bf16.msra.mxu0 %v2269
      %2281 = vmatpush.bf16.msra.mxu0 %v2268
      %2282 = vmatpush.bf16.msra.mxu0 %v2267
      %2283 = vmatpush.bf16.msra.mxu0 %v2266
      %2284 = vmatpush.bf16.msra.mxu0 %v2265
      %2285 = vmatpush.bf16.msra.mxu0 %v2264
      %2286 = vmatpush.bf16.msra.mxu0 %v2263
      %2287 = vmatmul.bf16.gmra.mxu0 %v1481
      %v2288 = vpop.f32.mrf.mxu0
      %v2289 = vadd.f32 0.0, %v2288
      %v2290 = vpop.f32.mrf.mxu0
      %2291 = vmatmul.bf16.gmra.mxu0 %v1490
      %v2292 = vpop.f32.mrf.mxu0
      %v2293 = vadd.f32 0.0, %v2292
      %v2294 = vpop.f32.mrf.mxu0
      %2295 = vmatmul.bf16.gmra.mxu0 %v1499
      %v2296 = vpop.f32.mrf.mxu0
      %v2297 = vadd.f32 0.0, %v2296
      %v2298 = vpop.f32.mrf.mxu0
      %2299 = vmatmul.bf16.gmra.mxu0 %v1508
      %v2300 = vpop.f32.mrf.mxu0
      %v2301 = vadd.f32 0.0, %v2300
      %v2302 = vpop.f32.mrf.mxu0
      %2303 = vmatmul.bf16.gmra.mxu0 %v1517
      %v2304 = vpop.f32.mrf.mxu0
      %v2305 = vadd.f32 0.0, %v2304
      %v2306 = vpop.f32.mrf.mxu0
      %2307 = vmatmul.bf16.gmra.mxu0 %v1841
      %v2308 = vpop.f32.mrf.mxu0
      %v2309 = vadd.f32 0.0, %v2308
      %v2310 = vpop.f32.mrf.mxu0
      %2311 = vmatmul.bf16.gmra.mxu0 %v2219
      %v2312 = vpop.f32.mrf.mxu0
      %v2313 = vadd.f32 0.0, %v2312
      %v2314 = vpop.f32.mrf.mxu0
      %2315 = vmatmul.bf16.gmra.mxu0 %v2228
      %v2316 = vpop.f32.mrf.mxu0
      %v2317 = vadd.f32 0.0, %v2316
      %v2318 = vpop.f32.mrf.mxu0
      %2319 = vdwg.mxu0
      %v2320 = vadd.f32 %v2185, %v2289
      %v2321 = vadd.f32 %v2186, %v2293
      %v2322 = vadd.f32 %v2187, %v2297
      %v2323 = vadd.f32 %v2188, %v2301
      %v2324 = vadd.f32 %v2189, %v2305
      %v2325 = vadd.f32 %v2190, %v2309
      %v2326 = vadd.f32 %v2191, %v2313
      %v2327 = vadd.f32 %v2192, %v2317
      %v2328 = vpack.c.bf16 %v1307, %v1306
      %v2329 = vld [vmem:[%s4 + $0x1c0] sm:$0xf]
      %v2330 = vld [vmem:[%s4 + $0x1c4] sm:$0xf]
      %v2331 = vld [vmem:[%s4 + $0x1c8] sm:$0xf]
      %v2332 = vld [vmem:[%s4 + $0x1cc] sm:$0xf]
      %v2333 = vld [vmem:[%s4 + $0x1d0] sm:$0xf]
      %v2334 = vld [vmem:[%s4 + $0x1d4] sm:$0xf]
      %v2335 = vld [vmem:[%s4 + $0x1d8] sm:$0xf]
      %v2336 = vld [vmem:[%s4 + $0x1dc] sm:$0xf]
      %v2337 = vld [vmem:[%s4 + $0x1e0] sm:$0xf]
      %v2338 = vld [vmem:[%s4 + $0x1e4] sm:$0xf]
      %v2339 = vld [vmem:[%s4 + $0x1e8] sm:$0xf]
      %v2340 = vld [vmem:[%s4 + $0x1ec] sm:$0xf]
      %v2341 = vld [vmem:[%s4 + $0x1f0] sm:$0xf]
      %v2342 = vld [vmem:[%s4 + $0x1f4] sm:$0xf]
      %v2343 = vld [vmem:[%s4 + $0x1f8] sm:$0xf]
      %v2344 = vld [vmem:[%s4 + $0x1fc] sm:$0xf]
      %v2361 = vunpack.c.l.b16 %v2329
      %v2362 = vunpack.c.l.b16 %v2330
      %v2363 = vunpack.c.l.b16 %v2331
      %v2364 = vunpack.c.l.b16 %v2332
      %v2365 = vunpack.c.l.b16 %v2333
      %v2366 = vunpack.c.l.b16 %v2334
      %v2367 = vunpack.c.l.b16 %v2335
      %v2368 = vunpack.c.l.b16 %v2336
      %v2369 = vunpack.c.l.b16 %v2337
      %v2370 = vunpack.c.l.b16 %v2338
      %v2371 = vunpack.c.l.b16 %v2339
      %v2372 = vunpack.c.l.b16 %v2340
      %v2373 = vunpack.c.l.b16 %v2341
      %v2374 = vunpack.c.l.b16 %v2342
      %v2375 = vunpack.c.l.b16 %v2343
      %v2376 = vunpack.c.l.b16 %v2344
      %v2377 = vpack.c.b16 %v2362, %v2361
      %v2378 = vpack.c.b16 %v2364, %v2363
      %v2379 = vpack.c.b16 %v2366, %v2365
      %v2380 = vpack.c.b16 %v2368, %v2367
      %v2381 = vpack.c.b16 %v2370, %v2369
      %v2382 = vpack.c.b16 %v2372, %v2371
      %v2383 = vpack.c.b16 %v2374, %v2373
      %v2384 = vpack.c.b16 %v2376, %v2375
      %2393 = vmatpush.bf16.msra.mxu0 %v2384
      %2394 = vmatpush.bf16.msra.mxu0 %v2383
      %2395 = vmatpush.bf16.msra.mxu0 %v2382
      %2396 = vmatpush.bf16.msra.mxu0 %v2381
      %2397 = vmatpush.bf16.msra.mxu0 %v2380
      %2398 = vmatpush.bf16.msra.mxu0 %v2379
      %2399 = vmatpush.bf16.msra.mxu0 %v2378
      %2400 = vmatpush.bf16.msra.mxu0 %v2377
      %2401 = vmatmul.bf16.gmra.mxu0 %v1336
      %v2402 = vpop.f32.mrf.mxu0
      %v2403 = vadd.f32 0.0, %v2402
      %v2404 = vpop.f32.mrf.mxu0
      %2405 = vmatmul.bf16.gmra.mxu0 %v1337
      %v2406 = vpop.f32.mrf.mxu0
      %v2407 = vadd.f32 0.0, %v2406
      %v2408 = vpop.f32.mrf.mxu0
      %2409 = vmatmul.bf16.gmra.mxu0 %v1338
      %v2410 = vpop.f32.mrf.mxu0
      %v2411 = vadd.f32 0.0, %v2410
      %v2412 = vpop.f32.mrf.mxu0
      %2413 = vmatmul.bf16.gmra.mxu0 %v1339
      %v2414 = vpop.f32.mrf.mxu0
      %v2415 = vadd.f32 0.0, %v2414
      %v2416 = vpop.f32.mrf.mxu0
      %2417 = vmatmul.bf16.gmra.mxu0 %v1340
      %v2418 = vpop.f32.mrf.mxu0
      %v2419 = vadd.f32 0.0, %v2418
      %v2420 = vpop.f32.mrf.mxu0
      %2421 = vmatmul.bf16.gmra.mxu0 %v1341
      %v2422 = vpop.f32.mrf.mxu0
      %v2423 = vadd.f32 0.0, %v2422
      %v2424 = vpop.f32.mrf.mxu0
      %2425 = vmatmul.bf16.gmra.mxu0 %v1950
      %v2426 = vpop.f32.mrf.mxu0
      %v2427 = vadd.f32 0.0, %v2426
      %v2428 = vpop.f32.mrf.mxu0
      %2429 = vmatmul.bf16.gmra.mxu0 %v2328
      %v2430 = vpop.f32.mrf.mxu0
      %v2431 = vadd.f32 0.0, %v2430
      %v2432 = vpop.f32.mrf.mxu0
      %2433 = vdwg.mxu0
      %v2434 = vadd.f32 %v2320, %v2403
      %v2435 = vadd.f32 %v2321, %v2407
      %v2436 = vadd.f32 %v2322, %v2411
      %v2437 = vadd.f32 %v2323, %v2415
      %v2438 = vadd.f32 %v2324, %v2419
      %v2439 = vadd.f32 %v2325, %v2423
      %v2440 = vadd.f32 %v2326, %v2427
      %v2441 = vadd.f32 %v2327, %v2431
      %v2442 = vpack.c.bf16 %v1308, %v1308
      %v2443 = vld [vmem:[%s4 + $0x200] sm:$0xf]
      %v2444 = vld [vmem:[%s4 + $0x204] sm:$0xf]
      %v2445 = vld [vmem:[%s4 + $0x208] sm:$0xf]
      %v2446 = vld [vmem:[%s4 + $0x20c] sm:$0xf]
      %v2447 = vld [vmem:[%s4 + $0x210] sm:$0xf]
      %v2448 = vld [vmem:[%s4 + $0x214] sm:$0xf]
      %v2449 = vld [vmem:[%s4 + $0x218] sm:$0xf]
      %v2450 = vld [vmem:[%s4 + $0x21c] sm:$0xf]
      %v2451 = vld [vmem:[%s4 + $0x220] sm:$0xf]
      %v2452 = vld [vmem:[%s4 + $0x224] sm:$0xf]
      %v2453 = vld [vmem:[%s4 + $0x228] sm:$0xf]
      %v2454 = vld [vmem:[%s4 + $0x22c] sm:$0xf]
      %v2455 = vld [vmem:[%s4 + $0x230] sm:$0xf]
      %v2456 = vld [vmem:[%s4 + $0x234] sm:$0xf]
      %v2457 = vld [vmem:[%s4 + $0x238] sm:$0xf]
      %v2458 = vld [vmem:[%s4 + $0x23c] sm:$0xf]
      %v2460 = vshll.u32 %v2328, 16
      %v2462 = vrot.slane %v2460, 1
      %v2463 = vsel %vm1641, %v2088, %v2462
      %v2464 = vshrl.u32 %v2328, 16
      %v2466 = vor.u32 %v2464, %v2462
      %v2468 = vshll.u32 %v2442, 16
      %v2470 = vrot.slane %v2468, 1
      %v2471 = vsel %vm1641, %v2466, %v2470
      %v2490 = vunpack.c.l.b16 %v2443
      %v2491 = vunpack.c.l.b16 %v2444
      %v2492 = vunpack.c.l.b16 %v2445
      %v2493 = vunpack.c.l.b16 %v2446
      %v2494 = vunpack.c.l.b16 %v2447
      %v2495 = vunpack.c.l.b16 %v2448
      %v2496 = vunpack.c.l.b16 %v2449
      %v2497 = vunpack.c.l.b16 %v2450
      %v2498 = vunpack.c.l.b16 %v2451
      %v2499 = vunpack.c.l.b16 %v2452
      %v2500 = vunpack.c.l.b16 %v2453
      %v2501 = vunpack.c.l.b16 %v2454
      %v2502 = vunpack.c.l.b16 %v2455
      %v2503 = vunpack.c.l.b16 %v2456
      %v2504 = vunpack.c.l.b16 %v2457
      %v2505 = vunpack.c.l.b16 %v2458
      %v2506 = vpack.c.b16 %v2491, %v2490
      %v2507 = vpack.c.b16 %v2493, %v2492
      %v2508 = vpack.c.b16 %v2495, %v2494
      %v2509 = vpack.c.b16 %v2497, %v2496
      %v2510 = vpack.c.b16 %v2499, %v2498
      %v2511 = vpack.c.b16 %v2501, %v2500
      %v2512 = vpack.c.b16 %v2503, %v2502
      %v2513 = vpack.c.b16 %v2505, %v2504
      %2522 = vmatpush.bf16.msra.mxu0 %v2513
      %2523 = vmatpush.bf16.msra.mxu0 %v2512
      %2524 = vmatpush.bf16.msra.mxu0 %v2511
      %2525 = vmatpush.bf16.msra.mxu0 %v2510
      %2526 = vmatpush.bf16.msra.mxu0 %v2509
      %2527 = vmatpush.bf16.msra.mxu0 %v2508
      %2528 = vmatpush.bf16.msra.mxu0 %v2507
      %2529 = vmatpush.bf16.msra.mxu0 %v2506
      %2530 = vmatmul.bf16.gmra.mxu0 %v1669
      %v2531 = vpop.f32.mrf.mxu0
      %v2532 = vadd.f32 0.0, %v2531
      %v2533 = vpop.f32.mrf.mxu0
      %2534 = vmatmul.bf16.gmra.mxu0 %v1677
      %v2535 = vpop.f32.mrf.mxu0
      %v2536 = vadd.f32 0.0, %v2535
      %v2537 = vpop.f32.mrf.mxu0
      %2538 = vmatmul.bf16.gmra.mxu0 %v1685
      %v2539 = vpop.f32.mrf.mxu0
      %v2540 = vadd.f32 0.0, %v2539
      %v2541 = vpop.f32.mrf.mxu0
      %2542 = vmatmul.bf16.gmra.mxu0 %v1693
      %v2543 = vpop.f32.mrf.mxu0
      %v2544 = vadd.f32 0.0, %v2543
      %v2545 = vpop.f32.mrf.mxu0
      %2546 = vmatmul.bf16.gmra.mxu0 %v1701
      %v2547 = vpop.f32.mrf.mxu0
      %v2548 = vadd.f32 0.0, %v2547
      %v2549 = vpop.f32.mrf.mxu0
      %2550 = vmatmul.bf16.gmra.mxu0 %v2085
      %v2551 = vpop.f32.mrf.mxu0
      %v2552 = vadd.f32 0.0, %v2551
      %v2553 = vpop.f32.mrf.mxu0
      %2554 = vmatmul.bf16.gmra.mxu0 %v2463
      %v2555 = vpop.f32.mrf.mxu0
      %v2556 = vadd.f32 0.0, %v2555
      %v2557 = vpop.f32.mrf.mxu0
      %2558 = vmatmul.bf16.gmra.mxu0 %v2471
      %v2559 = vpop.f32.mrf.mxu0
      %v2560 = vadd.f32 0.0, %v2559
      %v2561 = vpop.f32.mrf.mxu0
      %2562 = vdwg.mxu0
      %v2563 = vadd.f32 %v2434, %v2532
      %v2564 = vadd.f32 %v2435, %v2536
      %v2565 = vadd.f32 %v2436, %v2540
      %v2566 = vadd.f32 %v2437, %v2544
      %v2567 = vadd.f32 %v2438, %v2548
      %v2568 = vadd.f32 %v2439, %v2552
      %v2569 = vadd.f32 %v2440, %v2556
      %v2570 = vadd.f32 %v2441, %v2560
      %v2572 = vperm.slane %v1259, 0
      %v2574 = vmul.f32 %v2563, %v2572
      %v2575 = vmul.f32 %v2564, %v2572
      %v2576 = vmul.f32 %v2565, %v2572
      %v2577 = vmul.f32 %v2566, %v2572
      %v2578 = vmul.f32 %v2567, %v2572
      %v2579 = vmul.f32 %v2568, %v2572
      %v2580 = vmul.f32 %v2569, %v2572
      %v2581 = vmul.f32 %v2570, %v2572
      %v2583 = vperm.slane %v1260, 0
      %v2585 = vadd.f32 %v2574, %v2583
      %v2586 = vadd.f32 %v2575, %v2583
      %v2587 = vadd.f32 %v2576, %v2583
      %v2588 = vadd.f32 %v2577, %v2583
      %v2589 = vadd.f32 %v2578, %v2583
      %v2590 = vadd.f32 %v2579, %v2583
      %v2591 = vadd.f32 %v2580, %v2583
      %v2592 = vadd.f32 %v2581, %v2583
      %v2593 = vmax.f32 %v2585, 0.0
      %v2594 = vmax.f32 %v2586, 0.0
      %v2595 = vmax.f32 %v2587, 0.0
      %v2596 = vmax.f32 %v2588, 0.0
      %v2597 = vmax.f32 %v2589, 0.0
      %v2598 = vmax.f32 %v2590, 0.0
      %v2599 = vmax.f32 %v2591, 0.0
      %v2600 = vmax.f32 %v2592, 0.0
      %2601 = vst [vmem:[%s278] sm:$0xff] %v2593
      %2602 = vst [vmem:[%s278 + $0x8] sm:$0xff] %v2594
      %2603 = vst [vmem:[%s278 + $0x10] sm:$0xff] %v2595
      %2604 = vst [vmem:[%s278 + $0x18] sm:$0xff] %v2596
      %2605 = vst [vmem:[%s278 + $0x20] sm:$0xff] %v2597
      %2606 = vst [vmem:[%s278 + $0x28] sm:$0xff] %v2598
      %2607 = vst [vmem:[%s278 + $0x30] sm:$0xff] %v2599
      %2608 = vst [vmem:[%s278 + $0x38] sm:$0xff] %v2600
      %p2609 = scmp.lt.s32.totalorder %s18, 1
      %s2610 = scalar_select %p2609, %s18, 1
      %s2611 = smul.addr %s2610, 8
      %s2612 = smul.addr %s2611, 8
      %s2613 = scalar_lea.vmem %s7, %s2612
      // Predicated region
      $region49: #{_down_nchw_jit.1} parent=47 // pred_check
        %p2614 = pneg %p188
      $region50: #{_down_nchw_jit.1} parent=47 // pred_check_branch
        %2616 = sbr.rel (%p2614) target = $region52
      $region51: #{_down_nchw_jit.1} parent=47 // pred_region
        _
      $region52: #{_down_nchw_jit.1} parent=47 // pred_fallthru
        _
    $region48: #{_down_nchw_jit.1} parent=5 // pred_fallthru
      _
    %p2617 = scmp.le.s32.totalorder 2, %s13
    // Predicated region
    $region53: #{_down_nchw_jit.1} parent=5 // pred_check
      %p2618 = pneg %p2617
    $region54: #{_down_nchw_jit.1} parent=5 // pred_check_branch
      %2620 = sbr.rel (%p2618) target = $region56
    $region55: #{_down_nchw_jit.1} parent=5 // pred_region
      %s2621 = ssub.s32 %s13, 2
      // Predicated region
      $region57: #{_down_nchw_jit.1} parent=55 // pred_check
        %p2622 = pneg %p194
      $region58: #{_down_nchw_jit.1} parent=55 // pred_check_branch
        %2624 = sbr.rel (%p2622) target = $region60
      $region59: #{_down_nchw_jit.1} parent=55 // pred_region
        %p2625 = scmp.lt.s32.totalorder %s19, 1
        %s2626 = scalar_select %p2625, %s19, 1
        %s2627 = smul.addr %s2626, 8
        %s2628 = smul.addr %s2627, 8
        %s2629 = scalar_lea.vmem %s7, %s2628
      $region60: #{_down_nchw_jit.1} parent=55 // pred_fallthru
        _
    $region56: #{_down_nchw_jit.1} parent=5 // pred_fallthru
      _
  $region6: #{_down_nchw_jit.1} parent=0 // loop_footer
    %s17 = sadd.s32 1, %s13
  $region7: #{_down_nchw_jit.1} parent=0 // loop_footer_branch
    %12 = sbr.rel target = $region3
  $region8: #{_down_nchw_jit.1} parent=0 // loop_exit
    _

</llo_original>
